<compile_context>
chip_gen: v6e
topology: v6e:2x2x1
jax: 0.10.0
libtpu: 0.0.40
codegen_flags: <defaults>
</compile_context>

<pallas_src>
import functools
import numpy as np
import jax
import jax.numpy as jnp
from jax import lax
from jax.experimental import pallas as pl
from jax.experimental.pallas import tpu as pltpu

# Constants referenced (but not defined) in the PyTorch snippet.
NUM_TILES = 11
NUM_COLORS = 6

EMBEDDING_DIM = 16
FEATURES_DIM = 64
C0 = 2 * EMBEDDING_DIM          # channels after embedding concat (= conv1 in-channels)
H0 = W0 = 5
C2_PAD = 384                    # conv2 output 288 zero-padded to 3*128 lanes


def _round_up(x, m):
    return ((x + m - 1) // m) * m


def _conv2x2_to_dense(w_hwio, h_in, w_in):
    """(2,2,Cin,Cout) conv weight -> dense (h_in*w_in*Cin, (h_in-1)*(w_in-1)*Cout).

    Input flatten order (h, w, c); output flatten order (oh, ow, c).
    Each dense entry is written exactly once, so no accumulation error."""
    kh, kw, cin, cout = w_hwio.shape
    h_out, w_out = h_in - kh + 1, w_in - kw + 1
    w_np = np.asarray(w_hwio, dtype=np.float32)
    dense = np.zeros((h_in, w_in, cin, h_out, w_out, cout), dtype=np.float32)
    for oh in range(h_out):
        for ow in range(w_out):
            for dy in range(kh):
                for dx in range(kw):
                    dense[oh + dy, ow + dx, :, oh, ow, :] += w_np[dy, dx]
    return jnp.asarray(dense.reshape(h_in * w_in * cin, h_out * w_out * cout))


def _encoder_kernel(x_ref, w1_ref, b1_ref, w2_ref, b2_ref, w3_ref, b3_ref,
                    wl_ref, bl_ref, o_ref):
    # bf16 MXU inputs, f32 accumulation; bias + ReLU in f32.
    dot = functools.partial(jnp.dot, preferred_element_type=jnp.float32)
    h = jnp.maximum(dot(x_ref[...], w1_ref[...]) + b1_ref[...], 0.0)      # conv1 + ReLU
    h = jnp.maximum(dot(h.astype(jnp.bfloat16), w2_ref[...]) + b2_ref[...], 0.0)  # conv2 + ReLU
    h = jnp.maximum(dot(h.astype(jnp.bfloat16), w3_ref[...]) + b3_ref[...], 0.0)  # conv3 + ReLU
    o_ref[...] = (dot(h.astype(jnp.bfloat16), wl_ref[...]) + bl_ref[...]
                  ).astype(o_ref.dtype)                                   # Linear


def init_params(key):
    ks = jax.random.split(key, 10)
    p = {}
    p["entity_emb"] = jax.random.normal(ks[0], (NUM_TILES + 1, EMBEDDING_DIM), jnp.float32)
    p["color_emb"] = jax.random.normal(ks[1], (NUM_COLORS, EMBEDDING_DIM), jnp.float32)

    def conv_w(k, cin, cout):
        return jax.random.normal(k, (2, 2, cin, cout), jnp.float32) / np.sqrt(4.0 * cin)

    p["w1"] = conv_w(ks[2], C0, 32)
    p["b1"] = 0.01 * jax.random.normal(ks[3], (32,), jnp.float32)
    p["w2"] = conv_w(ks[4], 32, 32)
    p["b2"] = 0.01 * jax.random.normal(ks[5], (32,), jnp.float32)
    p["w3"] = conv_w(ks[6], 32, 32)
    p["b3"] = 0.01 * jax.random.normal(ks[7], (32,), jnp.float32)
    # Linear weight in (h, w, c)-flatten order (matches the kernel's flatten).
    p["wl"] = jax.random.normal(ks[8], (32 * 2 * 2, FEATURES_DIM), jnp.float32) / np.sqrt(128.0)
    p["bl"] = 0.01 * jax.random.normal(ks[9], (FEATURES_DIM,), jnp.float32)
    return p


def prepare_params(params):
    """One-time parameter setup: conv -> dense matmul weights, bf16 cast, padding."""
    w1d = _conv2x2_to_dense(params["w1"], 5, 5)                 # (800, 512)
    w2d = _conv2x2_to_dense(params["w2"], 4, 4)                 # (512, 288)
    w3d = _conv2x2_to_dense(params["w3"], 3, 3)                 # (288, 128)
    # Zero-pad the 288-wide intermediate to 384 = 3*128 (lane-dense, no extra MXU passes).
    w2d = jnp.pad(w2d, ((0, 0), (0, C2_PAD - 288)))             # (512, 384)
    w3d = jnp.pad(w3d, ((0, C2_PAD - 288), (0, 0)))             # (384, 128)
    b1d = jnp.tile(params["b1"], 4 * 4)[None, :]                # (1, 512) (oh, ow, c) order
    b2d = jnp.pad(jnp.tile(params["b2"], 3 * 3), (0, C2_PAD - 288))[None, :]   # (1, 384)
    b3d = jnp.tile(params["b3"], 2 * 2)[None, :]                # (1, 128)
    prep = {
        "entity_emb": params["entity_emb"],
        "color_emb": params["color_emb"],
        "w1d": w1d.astype(jnp.bfloat16),
        "w2d": w2d.astype(jnp.bfloat16),
        "w3d": w3d.astype(jnp.bfloat16),
        "wl": params["wl"].astype(jnp.bfloat16),                # (128, 64)
        "b1d": b1d, "b2d": b2d, "b3d": b3d,
        "bl": params["bl"][None, :],                            # (1, 64)
    }
    return prep


def observation_encoder(img, prep, tn=512):
    B, S = img.shape[0], img.shape[1]
    assert img.shape == (B, S, 5, 5, 2)
    n = B * S
    flat = img.reshape(n, 5, 5, 2)

    # EmbeddingEncoder: tiny-table gathers done as plain-JAX glue, output in bf16
    # so the kernel's dominant HBM input stream is half-width.
    # TODO(synk): the nn.Embedding gather has no clean/cheap Pallas-TPU equivalent
    # (an in-kernel select/one-hot gather would be VPU-bound), so it stays in XLA.
    ent = jnp.take(prep["entity_emb"], flat[..., 0], axis=0)
    col = jnp.take(prep["color_emb"], flat[..., 1], axis=0)
    x = jnp.concatenate([ent, col], axis=-1)                    # (N, 5, 5, 32) NHWC
    x2d = x.reshape(n, H0 * W0 * C0).astype(jnp.bfloat16)       # (N, 800) bf16

    # Batch tile: big (multiple of 256) for MXU occupancy, clamped for tiny inputs.
    tn = max(16, min(tn, _round_up(n, 16)))
    grid = pl.cdiv(n, tn)

    def full(a):
        return pl.BlockSpec(a.shape, lambda i: (0,) * a.ndim)

    out = pl.pallas_call(
        _encoder_kernel,
        out_shape=jax.ShapeDtypeStruct((n, FEATURES_DIM), jnp.float32),
        grid=(grid,),
        in_specs=[
            pl.BlockSpec((tn, H0 * W0 * C0), lambda i: (i, 0)),
            full(prep["w1d"]), full(prep["b1d"]),
            full(prep["w2d"]), full(prep["b2d"]),
            full(prep["w3d"]), full(prep["b3d"]),
            full(prep["wl"]), full(prep["bl"]),
        ],
        out_specs=pl.BlockSpec((tn, FEATURES_DIM), lambda i: (i, 0)),
        compiler_params=pltpu.CompilerParams(dimension_semantics=("parallel",)),
    )(x2d, prep["w1d"], prep["b1d"], prep["w2d"], prep["b2d"],
      prep["w3d"], prep["b3d"], prep["wl"], prep["bl"])

    return out.reshape(B, S, FEATURES_DIM)


def ref_forward(img, params):
    """Pure-JAX reference (lax conv, f32 HIGHEST) using the same parameters / layout."""
    B, S = img.shape[0], img.shape[1]
    n = B * S
    flat = img.reshape(n, 5, 5, 2)
    ent = jnp.take(params["entity_emb"], flat[..., 0], axis=0)
    col = jnp.take(params["color_emb"], flat[..., 1], axis=0)
    h = jnp.concatenate([ent, col], axis=-1).astype(jnp.float32)
    for w, b in ((params["w1"], params["b1"]),
                 (params["w2"], params["b2"]),
                 (params["w3"], params["b3"])):
        h = lax.conv_general_dilated(h, w, (1, 1), "VALID",
                                     dimension_numbers=("NHWC", "HWIO", "NHWC"),
                                     precision=lax.Precision.HIGHEST) + b
        h = jnp.maximum(h, 0.0)
    h = h.reshape(n, -1)                                        # (h, w, c) flatten order
    out = jnp.dot(h, params["wl"], precision=lax.Precision.HIGHEST) + params["bl"]
    return out.reshape(B, S, FEATURES_DIM)


if __name__ == "__main__":
    key = jax.random.PRNGKey(0)
    pkey, ikey1, ikey2 = jax.random.split(key, 3)
    params = init_params(pkey)
    prep = prepare_params(params)

    B, S = 2, 8
    ent_idx = jax.random.randint(ikey1, (B, S, 5, 5, 1), 0, NUM_TILES + 1)
    col_idx = jax.random.randint(ikey2, (B, S, 5, 5, 1), 0, NUM_COLORS)
    img = jnp.concatenate([ent_idx, col_idx], axis=-1).astype(jnp.int32)  # (2,8,5,5,2)

    run = jax.jit(observation_encoder)
    out = jax.block_until_ready(run(img, prep))
    assert out.shape == (B, S, FEATURES_DIM) and out.dtype == jnp.float32

    ref = ref_forward(img, params)
    # bf16 MXU inputs with f32 accumulation vs. HIGHEST-f32 reference: loose tolerance.
    if not np.allclose(np.asarray(out), np.asarray(ref), rtol=5e-2, atol=5e-2):
        raise AssertionError("Pallas kernel output mismatches JAX reference")

    print("KERNEL_OK")
</pallas_src>

<mosaic_0001>
module attributes {stable_mosaic.version = 11 : i64} {
  func.func @_encoder_kernel(%arg0: i32, %arg1: memref<16x800xbf16, #tpu.memory_space<vmem>>, %arg2: memref<800x512xbf16, #tpu.memory_space<vmem>>, %arg3: memref<1x512xf32, #tpu.memory_space<vmem>>, %arg4: memref<512x384xbf16, #tpu.memory_space<vmem>>, %arg5: memref<1x384xf32, #tpu.memory_space<vmem>>, %arg6: memref<384x128xbf16, #tpu.memory_space<vmem>>, %arg7: memref<1x128xf32, #tpu.memory_space<vmem>>, %arg8: memref<128x64xbf16, #tpu.memory_space<vmem>>, %arg9: memref<1x64xf32, #tpu.memory_space<vmem>>, %arg10: memref<16x64xf32, #tpu.memory_space<vmem>>) attributes {dimension_semantics = [#tpu.dimension_semantics<parallel>], iteration_bounds = array<i64: 1>, scalar_prefetch = 0 : i64, scratch_operands = 0 : i64, tpu.core_type = #tpu.core_type<tc>, window_params = [{transform_indices = @transform_0, window_bounds = array<i64: 16, 800>}, {pipeline_mode = #tpu.pipeline_mode<synchronous>, transform_indices = @transform_1, window_bounds = array<i64: 800, 512>}, {pipeline_mode = #tpu.pipeline_mode<synchronous>, transform_indices = @transform_2, window_bounds = array<i64: 1, 512>}, {pipeline_mode = #tpu.pipeline_mode<synchronous>, transform_indices = @transform_3, window_bounds = array<i64: 512, 384>}, {pipeline_mode = #tpu.pipeline_mode<synchronous>, transform_indices = @transform_4, window_bounds = array<i64: 1, 384>}, {pipeline_mode = #tpu.pipeline_mode<synchronous>, transform_indices = @transform_5, window_bounds = array<i64: 384, 128>}, {pipeline_mode = #tpu.pipeline_mode<synchronous>, transform_indices = @transform_6, window_bounds = array<i64: 1, 128>}, {pipeline_mode = #tpu.pipeline_mode<synchronous>, transform_indices = @transform_7, window_bounds = array<i64: 128, 64>}, {pipeline_mode = #tpu.pipeline_mode<synchronous>, transform_indices = @transform_8, window_bounds = array<i64: 1, 64>}, {transform_indices = @transform_9, window_bounds = array<i64: 16, 64>}]} {
    %c0 = arith.constant 0 : index
    %c0_0 = arith.constant 0 : index
    %0 = vector.load %arg1[%c0, %c0_0] : memref<16x800xbf16, #tpu.memory_space<vmem>>, vector<16x800xbf16>
    %c0_1 = arith.constant 0 : index
    %c0_2 = arith.constant 0 : index
    %1 = vector.load %arg2[%c0_1, %c0_2] : memref<800x512xbf16, #tpu.memory_space<vmem>>, vector<800x512xbf16>
    %cst = arith.constant dense<0.000000e+00> : vector<16x512xf32>
    %2 = tpu.matmul %0, %1, %cst {dimension_numbers = #tpu.dot_dimension_numbers<[1], [0], [0], [1], [0, 0, 1, 1], [], []>} : vector<16x800xbf16>, vector<800x512xbf16>, vector<16x512xf32> -> vector<16x512xf32>
    %c0_3 = arith.constant 0 : index
    %c0_4 = arith.constant 0 : index
    %3 = vector.load %arg3[%c0_3, %c0_4] : memref<1x512xf32, #tpu.memory_space<vmem>>, vector<1x512xf32>
    %4 = vector.broadcast %3 : vector<1x512xf32> to vector<16x512xf32>
    %5 = arith.addf %2, %4 : vector<16x512xf32>
    %cst_5 = arith.constant 0.000000e+00 : f32
    %6 = vector.broadcast %cst_5 : f32 to vector<16x512xf32>
    %7 = arith.maximumf %5, %6 : vector<16x512xf32>
    %8 = arith.truncf %7 : vector<16x512xf32> to vector<16x512xbf16>
    %c0_6 = arith.constant 0 : index
    %c0_7 = arith.constant 0 : index
    %9 = vector.load %arg4[%c0_6, %c0_7] : memref<512x384xbf16, #tpu.memory_space<vmem>>, vector<512x384xbf16>
    %cst_8 = arith.constant dense<0.000000e+00> : vector<16x384xf32>
    %10 = tpu.matmul %8, %9, %cst_8 {dimension_numbers = #tpu.dot_dimension_numbers<[1], [0], [0], [1], [0, 0, 1, 1], [], []>} : vector<16x512xbf16>, vector<512x384xbf16>, vector<16x384xf32> -> vector<16x384xf32>
    %c0_9 = arith.constant 0 : index
    %c0_10 = arith.constant 0 : index
    %11 = vector.load %arg5[%c0_9, %c0_10] : memref<1x384xf32, #tpu.memory_space<vmem>>, vector<1x384xf32>
    %12 = vector.broadcast %11 : vector<1x384xf32> to vector<16x384xf32>
    %13 = arith.addf %10, %12 : vector<16x384xf32>
    %cst_11 = arith.constant 0.000000e+00 : f32
    %14 = vector.broadcast %cst_11 : f32 to vector<16x384xf32>
    %15 = arith.maximumf %13, %14 : vector<16x384xf32>
    %16 = arith.truncf %15 : vector<16x384xf32> to vector<16x384xbf16>
    %c0_12 = arith.constant 0 : index
    %c0_13 = arith.constant 0 : index
    %17 = vector.load %arg6[%c0_12, %c0_13] : memref<384x128xbf16, #tpu.memory_space<vmem>>, vector<384x128xbf16>
    %cst_14 = arith.constant dense<0.000000e+00> : vector<16x128xf32>
    %18 = tpu.matmul %16, %17, %cst_14 {dimension_numbers = #tpu.dot_dimension_numbers<[1], [0], [0], [1], [0, 0, 1, 1], [], []>} : vector<16x384xbf16>, vector<384x128xbf16>, vector<16x128xf32> -> vector<16x128xf32>
    %c0_15 = arith.constant 0 : index
    %c0_16 = arith.constant 0 : index
    %19 = vector.load %arg7[%c0_15, %c0_16] : memref<1x128xf32, #tpu.memory_space<vmem>>, vector<1x128xf32>
    %20 = vector.broadcast %19 : vector<1x128xf32> to vector<16x128xf32>
    %21 = arith.addf %18, %20 : vector<16x128xf32>
    %cst_17 = arith.constant 0.000000e+00 : f32
    %22 = vector.broadcast %cst_17 : f32 to vector<16x128xf32>
    %23 = arith.maximumf %21, %22 : vector<16x128xf32>
    %24 = arith.truncf %23 : vector<16x128xf32> to vector<16x128xbf16>
    %c0_18 = arith.constant 0 : index
    %c0_19 = arith.constant 0 : index
    %25 = vector.load %arg8[%c0_18, %c0_19] : memref<128x64xbf16, #tpu.memory_space<vmem>>, vector<128x64xbf16>
    %cst_20 = arith.constant dense<0.000000e+00> : vector<16x64xf32>
    %26 = tpu.matmul %24, %25, %cst_20 {dimension_numbers = #tpu.dot_dimension_numbers<[1], [0], [0], [1], [0, 0, 1, 1], [], []>} : vector<16x128xbf16>, vector<128x64xbf16>, vector<16x64xf32> -> vector<16x64xf32>
    %c0_21 = arith.constant 0 : index
    %c0_22 = arith.constant 0 : index
    %27 = vector.load %arg9[%c0_21, %c0_22] : memref<1x64xf32, #tpu.memory_space<vmem>>, vector<1x64xf32>
    %28 = vector.broadcast %27 : vector<1x64xf32> to vector<16x64xf32>
    %29 = arith.addf %26, %28 : vector<16x64xf32>
    %c0_23 = arith.constant 0 : index
    %c0_24 = arith.constant 0 : index
    %30 = vector.load %arg10[%c0_23, %c0_24] : memref<16x64xf32, #tpu.memory_space<vmem>>, vector<16x64xf32>
    tpu.vector_store %arg10[%c0_23, %c0_24], %29 {strides = array<i32>} : memref<16x64xf32, #tpu.memory_space<vmem>>, vector<16x64xf32>,
    return
  }
  func.func @transform_0(%arg0: i32) -> (i32, i32) {
    %c0_i32 = arith.constant 0 : i32
    %c0_i32_0 = arith.constant 0 : i32
    return %arg0, %c0_i32 : i32, i32
  }
  func.func @transform_1(%arg0: i32) -> (i32, i32) {
    %c0_i32 = arith.constant 0 : i32
    %c0_i32_0 = arith.constant 0 : i32
    %c0_i32_1 = arith.constant 0 : i32
    return %c0_i32, %c0_i32_0 : i32, i32
  }
  func.func @transform_2(%arg0: i32) -> (i32, i32) {
    %c0_i32 = arith.constant 0 : i32
    %c0_i32_0 = arith.constant 0 : i32
    %c0_i32_1 = arith.constant 0 : i32
    return %c0_i32, %c0_i32_0 : i32, i32
  }
  func.func @transform_3(%arg0: i32) -> (i32, i32) {
    %c0_i32 = arith.constant 0 : i32
    %c0_i32_0 = arith.constant 0 : i32
    %c0_i32_1 = arith.constant 0 : i32
    return %c0_i32, %c0_i32_0 : i32, i32
  }
  func.func @transform_4(%arg0: i32) -> (i32, i32) {
    %c0_i32 = arith.constant 0 : i32
    %c0_i32_0 = arith.constant 0 : i32
    %c0_i32_1 = arith.constant 0 : i32
    return %c0_i32, %c0_i32_0 : i32, i32
  }
  func.func @transform_5(%arg0: i32) -> (i32, i32) {
    %c0_i32 = arith.constant 0 : i32
    %c0_i32_0 = arith.constant 0 : i32
    %c0_i32_1 = arith.constant 0 : i32
    return %c0_i32, %c0_i32_0 : i32, i32
  }
  func.func @transform_6(%arg0: i32) -> (i32, i32) {
    %c0_i32 = arith.constant 0 : i32
    %c0_i32_0 = arith.constant 0 : i32
    %c0_i32_1 = arith.constant 0 : i32
    return %c0_i32, %c0_i32_0 : i32, i32
  }
  func.func @transform_7(%arg0: i32) -> (i32, i32) {
    %c0_i32 = arith.constant 0 : i32
    %c0_i32_0 = arith.constant 0 : i32
    %c0_i32_1 = arith.constant 0 : i32
    return %c0_i32, %c0_i32_0 : i32, i32
  }
  func.func @transform_8(%arg0: i32) -> (i32, i32) {
    %c0_i32 = arith.constant 0 : i32
    %c0_i32_0 = arith.constant 0 : i32
    %c0_i32_1 = arith.constant 0 : i32
    return %c0_i32, %c0_i32_0 : i32, i32
  }
  func.func @transform_9(%arg0: i32) -> (i32, i32) {
    %c0_i32 = arith.constant 0 : i32
    %c0_i32_0 = arith.constant 0 : i32
    return %arg0, %c0_i32 : i32, i32
  }
}

</mosaic_0001>

<llo_original>
// kernel: observation_encoder.1
$region0: #{observation_encoder.1}
  #allocation0 [shape = 'u32[]', space=smem, size = 0x4, offset = 0x4, fixed_abs, tag = 'smem constant byte address 0x4 - core index']
  #allocation1 [shape = 'u32[144,128]{1,0:T(1,128)}', space=vmem, size = 0x12000, scoped, tag = 'internal scratch']
  %s0 = inlined_call_operand.vmem [shape: bf16[16,800], index: 0, kind: input, shape index: {}]
  %s1 = inlined_call_operand.vmem [shape: bf16[800,512], index: 1, kind: input, shape index: {}]
  %s2 = inlined_call_operand.vmem [shape: f32[1,512], index: 2, kind: input, shape index: {}]
  %s3 = inlined_call_operand.vmem [shape: bf16[512,384], index: 3, kind: input, shape index: {}]
  %s4 = inlined_call_operand.vmem [shape: f32[1,384], index: 4, kind: input, shape index: {}]
  %s5 = inlined_call_operand.vmem [shape: bf16[384,128], index: 5, kind: input, shape index: {}]
  %s6 = inlined_call_operand.vmem [shape: f32[1,128], index: 6, kind: input, shape index: {}]
  %s7 = inlined_call_operand.vmem [shape: bf16[128,64], index: 7, kind: input, shape index: {}]
  %s8 = inlined_call_operand.vmem [shape: f32[1,64], index: 8, kind: input, shape index: {}]
  %s9 = inlined_call_operand.hbm [shape: f32[16,64], index: 9, kind: output, shape index: {}]
  %s10 = sld [smem:[#allocation0]]
  $region46: #{observation_encoder.1} parent=0
    _
  %s12 = ssub.s32 1, %s10
  %s13 = scalar_select 0, %s12, %s10
  $region1: #{observation_encoder.1} parent=0
    #allocation2 [shape = 'u8[8192]{0}', space=vmem, size = 0x2000, scoped, tag = 'output window, operand 0, single buffered']
    #allocation3 [shape = 's32[1]{0}', space=sflag, size = 0x4, scoped, tag = 'scoped memory for observation_encoder.1']
    %14 = vsyncpa [#allocation3], 0
    // Predicated region
    $region2: #{observation_encoder.1} parent=1 // pred_check
      _
    $region3: #{observation_encoder.1} parent=1 // pred_check_branch
      %16 = sbr.rel (0) target = $region5
    $region4: #{observation_encoder.1} parent=1 // pred_region
      _
    $region5: #{observation_encoder.1} parent=1 // pred_fallthru
      _
    // Predicated region
    $region6: #{observation_encoder.1} parent=1 // pred_check
      _
    $region7: #{observation_encoder.1} parent=1 // pred_check_branch
      %18 = sbr.rel (0) target = $region9
    $region8: #{observation_encoder.1} parent=1 // pred_region
      _
    $region9: #{observation_encoder.1} parent=1 // pred_fallthru
      _
    // Predicated region
    $region10: #{observation_encoder.1} parent=1 // pred_check
      _
    $region11: #{observation_encoder.1} parent=1 // pred_check_branch
      %20 = sbr.rel (0) target = $region13
    $region12: #{observation_encoder.1} parent=1 // pred_region
      _
    $region13: #{observation_encoder.1} parent=1 // pred_fallthru
      _
    // Predicated region
    $region14: #{observation_encoder.1} parent=1 // pred_check
      _
    $region15: #{observation_encoder.1} parent=1 // pred_check_branch
      %22 = sbr.rel (0) target = $region17
    $region16: #{observation_encoder.1} parent=1 // pred_region
      _
    $region17: #{observation_encoder.1} parent=1 // pred_fallthru
      _
    // Predicated region
    $region18: #{observation_encoder.1} parent=1 // pred_check
      _
    $region19: #{observation_encoder.1} parent=1 // pred_check_branch
      %24 = sbr.rel (0) target = $region21
    $region20: #{observation_encoder.1} parent=1 // pred_region
      _
    $region21: #{observation_encoder.1} parent=1 // pred_fallthru
      _
    // Predicated region
    $region22: #{observation_encoder.1} parent=1 // pred_check
      _
    $region23: #{observation_encoder.1} parent=1 // pred_check_branch
      %26 = sbr.rel (0) target = $region25
    $region24: #{observation_encoder.1} parent=1 // pred_region
      _
    $region25: #{observation_encoder.1} parent=1 // pred_fallthru
      _
    // Predicated region
    $region26: #{observation_encoder.1} parent=1 // pred_check
      _
    $region27: #{observation_encoder.1} parent=1 // pred_check_branch
      %28 = sbr.rel (0) target = $region29
    $region28: #{observation_encoder.1} parent=1 // pred_region
      _
    $region29: #{observation_encoder.1} parent=1 // pred_fallthru
      _
    // Predicated region
    $region30: #{observation_encoder.1} parent=1 // pred_check
      _
    $region31: #{observation_encoder.1} parent=1 // pred_check_branch
      %30 = sbr.rel (0) target = $region33
    $region32: #{observation_encoder.1} parent=1 // pred_region
      _
    $region33: #{observation_encoder.1} parent=1 // pred_fallthru
      _
    // Predicated region
    $region34: #{observation_encoder.1} parent=1 // pred_check
      _
    $region35: #{observation_encoder.1} parent=1 // pred_check_branch
      %32 = sbr.rel (0) target = $region37
    $region36: #{observation_encoder.1} parent=1 // pred_region
      _
    $region37: #{observation_encoder.1} parent=1 // pred_fallthru
      _
    %v34 = vld [vmem:[%s0] sm:$0xff]
    %v35 = vld [vmem:[%s0 + $0x8] sm:$0xff]
    %v36 = vld [vmem:[%s0 + $0x10] sm:$0xff]
    %v37 = vld [vmem:[%s0 + $0x18] sm:$0xf]
    %v38 = vld [vmem:[%s0 + $0x1c] sm:$0xff]
    %v39 = vld [vmem:[%s0 + $0x24] sm:$0xff]
    %v40 = vld [vmem:[%s0 + $0x2c] sm:$0xff]
    %v41 = vld [vmem:[%s0 + $0x34] sm:$0xf]
    %v42 = vld [vmem:[%s1] sm:$0xff]
    %v43 = vld [vmem:[%s1 + $0x8] sm:$0xff]
    %v44 = vld [vmem:[%s1 + $0x10] sm:$0xff]
    %v45 = vld [vmem:[%s1 + $0x18] sm:$0xff]
    %v46 = vld [vmem:[%s1 + $0x20] sm:$0xff]
    %v47 = vld [vmem:[%s1 + $0x28] sm:$0xff]
    %v48 = vld [vmem:[%s1 + $0x30] sm:$0xff]
    %v49 = vld [vmem:[%s1 + $0x38] sm:$0xff]
    %v50 = vld [vmem:[%s1 + $0x40] sm:$0xff]
    %v51 = vld [vmem:[%s1 + $0x48] sm:$0xff]
    %v52 = vld [vmem:[%s1 + $0x50] sm:$0xff]
    %v53 = vld [vmem:[%s1 + $0x58] sm:$0xff]
    %v54 = vld [vmem:[%s1 + $0x60] sm:$0xff]
    %v55 = vld [vmem:[%s1 + $0x68] sm:$0xff]
    %v56 = vld [vmem:[%s1 + $0x70] sm:$0xff]
    %v57 = vld [vmem:[%s1 + $0x78] sm:$0xff]
    %v58 = vld [vmem:[%s1 + $0x80] sm:$0xff]
    %v59 = vld [vmem:[%s1 + $0x88] sm:$0xff]
    %v60 = vld [vmem:[%s1 + $0x90] sm:$0xff]
    %v61 = vld [vmem:[%s1 + $0x98] sm:$0xff]
    %v62 = vld [vmem:[%s1 + $0xa0] sm:$0xff]
    %v63 = vld [vmem:[%s1 + $0xa8] sm:$0xff]
    %v64 = vld [vmem:[%s1 + $0xb0] sm:$0xff]
    %v65 = vld [vmem:[%s1 + $0xb8] sm:$0xff]
    %v66 = vld [vmem:[%s1 + $0xc0] sm:$0xff]
    %v67 = vld [vmem:[%s1 + $0xc8] sm:$0xff]
    %v68 = vld [vmem:[%s1 + $0xd0] sm:$0xff]
    %v69 = vld [vmem:[%s1 + $0xd8] sm:$0xff]
    %v70 = vld [vmem:[%s1 + $0xe0] sm:$0xff]
    %v71 = vld [vmem:[%s1 + $0xe8] sm:$0xff]
    %v72 = vld [vmem:[%s1 + $0xf0] sm:$0xff]
    %v73 = vld [vmem:[%s1 + $0xf8] sm:$0xff]
    %v74 = vld [vmem:[%s1 + $0x100] sm:$0xff]
    %v75 = vld [vmem:[%s1 + $0x108] sm:$0xff]
    %v76 = vld [vmem:[%s1 + $0x110] sm:$0xff]
    %v77 = vld [vmem:[%s1 + $0x118] sm:$0xff]
    %v78 = vld [vmem:[%s1 + $0x120] sm:$0xff]
    %v79 = vld [vmem:[%s1 + $0x128] sm:$0xff]
    %v80 = vld [vmem:[%s1 + $0x130] sm:$0xff]
    %v81 = vld [vmem:[%s1 + $0x138] sm:$0xff]
    %v82 = vld [vmem:[%s1 + $0x140] sm:$0xff]
    %v83 = vld [vmem:[%s1 + $0x148] sm:$0xff]
    %v84 = vld [vmem:[%s1 + $0x150] sm:$0xff]
    %v85 = vld [vmem:[%s1 + $0x158] sm:$0xff]
    %v86 = vld [vmem:[%s1 + $0x160] sm:$0xff]
    %v87 = vld [vmem:[%s1 + $0x168] sm:$0xff]
    %v88 = vld [vmem:[%s1 + $0x170] sm:$0xff]
    %v89 = vld [vmem:[%s1 + $0x178] sm:$0xff]
    %v90 = vld [vmem:[%s1 + $0x180] sm:$0xff]
    %v91 = vld [vmem:[%s1 + $0x188] sm:$0xff]
    %v92 = vld [vmem:[%s1 + $0x190] sm:$0xff]
    %v93 = vld [vmem:[%s1 + $0x198] sm:$0xff]
    %v94 = vld [vmem:[%s1 + $0x1a0] sm:$0xff]
    %v95 = vld [vmem:[%s1 + $0x1a8] sm:$0xff]
    %v96 = vld [vmem:[%s1 + $0x1b0] sm:$0xff]
    %v97 = vld [vmem:[%s1 + $0x1b8] sm:$0xff]
    %v98 = vld [vmem:[%s1 + $0x1c0] sm:$0xff]
    %v99 = vld [vmem:[%s1 + $0x1c8] sm:$0xff]
    %v100 = vld [vmem:[%s1 + $0x1d0] sm:$0xff]
    %v101 = vld [vmem:[%s1 + $0x1d8] sm:$0xff]
    %v102 = vld [vmem:[%s1 + $0x1e0] sm:$0xff]
    %v103 = vld [vmem:[%s1 + $0x1e8] sm:$0xff]
    %v104 = vld [vmem:[%s1 + $0x1f0] sm:$0xff]
    %v105 = vld [vmem:[%s1 + $0x1f8] sm:$0xff]
    %v106 = vld [vmem:[%s1 + $0x200] sm:$0xff]
    %v107 = vld [vmem:[%s1 + $0x208] sm:$0xff]
    %v108 = vld [vmem:[%s1 + $0x210] sm:$0xff]
    %v109 = vld [vmem:[%s1 + $0x218] sm:$0xff]
    %v110 = vld [vmem:[%s1 + $0x220] sm:$0xff]
    %v111 = vld [vmem:[%s1 + $0x228] sm:$0xff]
    %v112 = vld [vmem:[%s1 + $0x230] sm:$0xff]
    %v113 = vld [vmem:[%s1 + $0x238] sm:$0xff]
    %v114 = vld [vmem:[%s1 + $0x240] sm:$0xff]
    %v115 = vld [vmem:[%s1 + $0x248] sm:$0xff]
    %v116 = vld [vmem:[%s1 + $0x250] sm:$0xff]
    %v117 = vld [vmem:[%s1 + $0x258] sm:$0xff]
    %v118 = vld [vmem:[%s1 + $0x260] sm:$0xff]
    %v119 = vld [vmem:[%s1 + $0x268] sm:$0xff]
    %v120 = vld [vmem:[%s1 + $0x270] sm:$0xff]
    %v121 = vld [vmem:[%s1 + $0x278] sm:$0xff]
    %v122 = vld [vmem:[%s1 + $0x280] sm:$0xff]
    %v123 = vld [vmem:[%s1 + $0x288] sm:$0xff]
    %v124 = vld [vmem:[%s1 + $0x290] sm:$0xff]
    %v125 = vld [vmem:[%s1 + $0x298] sm:$0xff]
    %v126 = vld [vmem:[%s1 + $0x2a0] sm:$0xff]
    %v127 = vld [vmem:[%s1 + $0x2a8] sm:$0xff]
    %v128 = vld [vmem:[%s1 + $0x2b0] sm:$0xff]
    %v129 = vld [vmem:[%s1 + $0x2b8] sm:$0xff]
    %v130 = vld [vmem:[%s1 + $0x2c0] sm:$0xff]
    %v131 = vld [vmem:[%s1 + $0x2c8] sm:$0xff]
    %v132 = vld [vmem:[%s1 + $0x2d0] sm:$0xff]
    %v133 = vld [vmem:[%s1 + $0x2d8] sm:$0xff]
    %v134 = vld [vmem:[%s1 + $0x2e0] sm:$0xff]
    %v135 = vld [vmem:[%s1 + $0x2e8] sm:$0xff]
    %v136 = vld [vmem:[%s1 + $0x2f0] sm:$0xff]
    %v137 = vld [vmem:[%s1 + $0x2f8] sm:$0xff]
    %v138 = vld [vmem:[%s1 + $0x300] sm:$0xff]
    %v139 = vld [vmem:[%s1 + $0x308] sm:$0xff]
    %v140 = vld [vmem:[%s1 + $0x310] sm:$0xff]
    %v141 = vld [vmem:[%s1 + $0x318] sm:$0xff]
    %v142 = vld [vmem:[%s1 + $0x320] sm:$0xff]
    %v143 = vld [vmem:[%s1 + $0x328] sm:$0xff]
    %v144 = vld [vmem:[%s1 + $0x330] sm:$0xff]
    %v145 = vld [vmem:[%s1 + $0x338] sm:$0xff]
    %v146 = vld [vmem:[%s1 + $0x340] sm:$0xff]
    %v147 = vld [vmem:[%s1 + $0x348] sm:$0xff]
    %v148 = vld [vmem:[%s1 + $0x350] sm:$0xff]
    %v149 = vld [vmem:[%s1 + $0x358] sm:$0xff]
    %v150 = vld [vmem:[%s1 + $0x360] sm:$0xff]
    %v151 = vld [vmem:[%s1 + $0x368] sm:$0xff]
    %v152 = vld [vmem:[%s1 + $0x370] sm:$0xff]
    %v153 = vld [vmem:[%s1 + $0x378] sm:$0xff]
    %v154 = vld [vmem:[%s1 + $0x380] sm:$0xff]
    %v155 = vld [vmem:[%s1 + $0x388] sm:$0xff]
    %v156 = vld [vmem:[%s1 + $0x390] sm:$0xff]
    %v157 = vld [vmem:[%s1 + $0x398] sm:$0xff]
    %v158 = vld [vmem:[%s1 + $0x3a0] sm:$0xff]
    %v159 = vld [vmem:[%s1 + $0x3a8] sm:$0xff]
    %v160 = vld [vmem:[%s1 + $0x3b0] sm:$0xff]
    %v161 = vld [vmem:[%s1 + $0x3b8] sm:$0xff]
    %v162 = vld [vmem:[%s1 + $0x3c0] sm:$0xff]
    %v163 = vld [vmem:[%s1 + $0x3c8] sm:$0xff]
    %v164 = vld [vmem:[%s1 + $0x3d0] sm:$0xff]
    %v165 = vld [vmem:[%s1 + $0x3d8] sm:$0xff]
    %v166 = vld [vmem:[%s1 + $0x3e0] sm:$0xff]
    %v167 = vld [vmem:[%s1 + $0x3e8] sm:$0xff]
    %v168 = vld [vmem:[%s1 + $0x3f0] sm:$0xff]
    %v169 = vld [vmem:[%s1 + $0x3f8] sm:$0xff]
    %v170 = vld [vmem:[%s1 + $0x400] sm:$0xff]
    %v171 = vld [vmem:[%s1 + $0x408] sm:$0xff]
    %v172 = vld [vmem:[%s1 + $0x410] sm:$0xff]
    %v173 = vld [vmem:[%s1 + $0x418] sm:$0xff]
    %v174 = vld [vmem:[%s1 + $0x420] sm:$0xff]
    %v175 = vld [vmem:[%s1 + $0x428] sm:$0xff]
    %v176 = vld [vmem:[%s1 + $0x430] sm:$0xff]
    %v177 = vld [vmem:[%s1 + $0x438] sm:$0xff]
    %v178 = vld [vmem:[%s1 + $0x440] sm:$0xff]
    %v179 = vld [vmem:[%s1 + $0x448] sm:$0xff]
    %v180 = vld [vmem:[%s1 + $0x450] sm:$0xff]
    %v181 = vld [vmem:[%s1 + $0x458] sm:$0xff]
    %v182 = vld [vmem:[%s1 + $0x460] sm:$0xff]
    %v183 = vld [vmem:[%s1 + $0x468] sm:$0xff]
    %v184 = vld [vmem:[%s1 + $0x470] sm:$0xff]
    %v185 = vld [vmem:[%s1 + $0x478] sm:$0xff]
    %v186 = vld [vmem:[%s1 + $0x480] sm:$0xff]
    %v187 = vld [vmem:[%s1 + $0x488] sm:$0xff]
    %v188 = vld [vmem:[%s1 + $0x490] sm:$0xff]
    %v189 = vld [vmem:[%s1 + $0x498] sm:$0xff]
    %v190 = vld [vmem:[%s1 + $0x4a0] sm:$0xff]
    %v191 = vld [vmem:[%s1 + $0x4a8] sm:$0xff]
    %v192 = vld [vmem:[%s1 + $0x4b0] sm:$0xff]
    %v193 = vld [vmem:[%s1 + $0x4b8] sm:$0xff]
    %v194 = vld [vmem:[%s1 + $0x4c0] sm:$0xff]
    %v195 = vld [vmem:[%s1 + $0x4c8] sm:$0xff]
    %v196 = vld [vmem:[%s1 + $0x4d0] sm:$0xff]
    %v197 = vld [vmem:[%s1 + $0x4d8] sm:$0xff]
    %v198 = vld [vmem:[%s1 + $0x4e0] sm:$0xff]
    %v199 = vld [vmem:[%s1 + $0x4e8] sm:$0xff]
    %v200 = vld [vmem:[%s1 + $0x4f0] sm:$0xff]
    %v201 = vld [vmem:[%s1 + $0x4f8] sm:$0xff]
    %v202 = vld [vmem:[%s1 + $0x500] sm:$0xff]
    %v203 = vld [vmem:[%s1 + $0x508] sm:$0xff]
    %v204 = vld [vmem:[%s1 + $0x510] sm:$0xff]
    %v205 = vld [vmem:[%s1 + $0x518] sm:$0xff]
    %v206 = vld [vmem:[%s1 + $0x520] sm:$0xff]
    %v207 = vld [vmem:[%s1 + $0x528] sm:$0xff]
    %v208 = vld [vmem:[%s1 + $0x530] sm:$0xff]
    %v209 = vld [vmem:[%s1 + $0x538] sm:$0xff]
    %v210 = vld [vmem:[%s1 + $0x540] sm:$0xff]
    %v211 = vld [vmem:[%s1 + $0x548] sm:$0xff]
    %v212 = vld [vmem:[%s1 + $0x550] sm:$0xff]
    %v213 = vld [vmem:[%s1 + $0x558] sm:$0xff]
    %v214 = vld [vmem:[%s1 + $0x560] sm:$0xff]
    %v215 = vld [vmem:[%s1 + $0x568] sm:$0xff]
    %v216 = vld [vmem:[%s1 + $0x570] sm:$0xff]
    %v217 = vld [vmem:[%s1 + $0x578] sm:$0xff]
    %v218 = vld [vmem:[%s1 + $0x580] sm:$0xff]
    %v219 = vld [vmem:[%s1 + $0x588] sm:$0xff]
    %v220 = vld [vmem:[%s1 + $0x590] sm:$0xff]
    %v221 = vld [vmem:[%s1 + $0x598] sm:$0xff]
    %v222 = vld [vmem:[%s1 + $0x5a0] sm:$0xff]
    %v223 = vld [vmem:[%s1 + $0x5a8] sm:$0xff]
    %v224 = vld [vmem:[%s1 + $0x5b0] sm:$0xff]
    %v225 = vld [vmem:[%s1 + $0x5b8] sm:$0xff]
    %v226 = vld [vmem:[%s1 + $0x5c0] sm:$0xff]
    %v227 = vld [vmem:[%s1 + $0x5c8] sm:$0xff]
    %v228 = vld [vmem:[%s1 + $0x5d0] sm:$0xff]
    %v229 = vld [vmem:[%s1 + $0x5d8] sm:$0xff]
    %v230 = vld [vmem:[%s1 + $0x5e0] sm:$0xff]
    %v231 = vld [vmem:[%s1 + $0x5e8] sm:$0xff]
    %v232 = vld [vmem:[%s1 + $0x5f0] sm:$0xff]
    %v233 = vld [vmem:[%s1 + $0x5f8] sm:$0xff]
    %v234 = vld [vmem:[%s1 + $0x600] sm:$0xff]
    %v235 = vld [vmem:[%s1 + $0x608] sm:$0xff]
    %v236 = vld [vmem:[%s1 + $0x610] sm:$0xff]
    %v237 = vld [vmem:[%s1 + $0x618] sm:$0xff]
    %v238 = vld [vmem:[%s1 + $0x620] sm:$0xff]
    %v239 = vld [vmem:[%s1 + $0x628] sm:$0xff]
    %v240 = vld [vmem:[%s1 + $0x630] sm:$0xff]
    %v241 = vld [vmem:[%s1 + $0x638] sm:$0xff]
    %v242 = vld [vmem:[%s2] sm:$0xf]
    %v244 = vlaneseq
    %v245 = vshrl.u32 %v244, 7
    %v246 = vsub.s32 0, %v245
    %v247 = vrot.slane %v242, %v246
    %v248 = vlaneseq
    %v249 = vshrl.u32 %v248, 7
    %v250 = vsub.s32 1, %v249
    %v251 = vrot.slane %v242, %v250
    %v252 = vlaneseq
    %v253 = vshrl.u32 %v252, 7
    %v254 = vsub.s32 2, %v253
    %v255 = vrot.slane %v242, %v254
    %v256 = vlaneseq
    %v257 = vshrl.u32 %v256, 7
    %v258 = vsub.s32 3, %v257
    %v259 = vrot.slane %v242, %v258
    %v272 = vunpack.c.l.b16 %v34
    %v273 = vunpack.c.h.b16 %v34
    %v274 = vunpack.c.l.b16 %v35
    %v275 = vunpack.c.h.b16 %v35
    %v276 = vunpack.c.l.b16 %v36
    %v277 = vunpack.c.h.b16 %v36
    %v278 = vunpack.c.l.b16 %v37
    %v279 = vunpack.c.l.b16 %v38
    %v280 = vunpack.c.h.b16 %v38
    %v281 = vunpack.c.l.b16 %v39
    %v282 = vunpack.c.h.b16 %v39
    %v283 = vunpack.c.l.b16 %v40
    %v284 = vunpack.c.h.b16 %v40
    %v285 = vunpack.c.l.b16 %v41
    %v286 = vpack.c.b16 %v279, %v272
    %v287 = vpack.c.b16 %v280, %v273
    %v288 = vpack.c.b16 %v281, %v274
    %v289 = vpack.c.b16 %v282, %v275
    %v290 = vpack.c.b16 %v283, %v276
    %v291 = vpack.c.b16 %v284, %v277
    %v292 = vpack.c.b16 %v285, %v278
    %v499 = vunpack.c.l.b16 %v42
    %v500 = vunpack.c.h.b16 %v42
    %v501 = vunpack.c.l.b16 %v43
    %v502 = vunpack.c.h.b16 %v43
    %v503 = vunpack.c.l.b16 %v44
    %v504 = vunpack.c.h.b16 %v44
    %v505 = vunpack.c.l.b16 %v45
    %v506 = vunpack.c.h.b16 %v45
    %v507 = vunpack.c.l.b16 %v46
    %v508 = vunpack.c.h.b16 %v46
    %v509 = vunpack.c.l.b16 %v47
    %v510 = vunpack.c.h.b16 %v47
    %v511 = vunpack.c.l.b16 %v48
    %v512 = vunpack.c.h.b16 %v48
    %v513 = vunpack.c.l.b16 %v49
    %v514 = vunpack.c.h.b16 %v49
    %v515 = vunpack.c.l.b16 %v50
    %v516 = vunpack.c.h.b16 %v50
    %v517 = vunpack.c.l.b16 %v51
    %v518 = vunpack.c.h.b16 %v51
    %v519 = vunpack.c.l.b16 %v52
    %v520 = vunpack.c.h.b16 %v52
    %v521 = vunpack.c.l.b16 %v53
    %v522 = vunpack.c.h.b16 %v53
    %v523 = vunpack.c.l.b16 %v54
    %v524 = vunpack.c.h.b16 %v54
    %v525 = vunpack.c.l.b16 %v55
    %v526 = vunpack.c.h.b16 %v55
    %v527 = vunpack.c.l.b16 %v56
    %v528 = vunpack.c.h.b16 %v56
    %v529 = vunpack.c.l.b16 %v57
    %v530 = vunpack.c.h.b16 %v57
    %v531 = vunpack.c.l.b16 %v58
    %v532 = vunpack.c.h.b16 %v58
    %v533 = vunpack.c.l.b16 %v59
    %v534 = vunpack.c.h.b16 %v59
    %v535 = vunpack.c.l.b16 %v60
    %v536 = vunpack.c.h.b16 %v60
    %v537 = vunpack.c.l.b16 %v61
    %v538 = vunpack.c.h.b16 %v61
    %v539 = vunpack.c.l.b16 %v62
    %v540 = vunpack.c.h.b16 %v62
    %v541 = vunpack.c.l.b16 %v63
    %v542 = vunpack.c.h.b16 %v63
    %v543 = vunpack.c.l.b16 %v64
    %v544 = vunpack.c.h.b16 %v64
    %v545 = vunpack.c.l.b16 %v65
    %v546 = vunpack.c.h.b16 %v65
    %v547 = vunpack.c.l.b16 %v66
    %v548 = vunpack.c.h.b16 %v66
    %v549 = vunpack.c.l.b16 %v67
    %v550 = vunpack.c.h.b16 %v67
    %v551 = vunpack.c.l.b16 %v68
    %v552 = vunpack.c.h.b16 %v68
    %v553 = vunpack.c.l.b16 %v69
    %v554 = vunpack.c.h.b16 %v69
    %v555 = vunpack.c.l.b16 %v70
    %v556 = vunpack.c.h.b16 %v70
    %v557 = vunpack.c.l.b16 %v71
    %v558 = vunpack.c.h.b16 %v71
    %v559 = vunpack.c.l.b16 %v72
    %v560 = vunpack.c.h.b16 %v72
    %v561 = vunpack.c.l.b16 %v73
    %v562 = vunpack.c.h.b16 %v73
    %v563 = vunpack.c.l.b16 %v74
    %v564 = vunpack.c.h.b16 %v74
    %v565 = vunpack.c.l.b16 %v75
    %v566 = vunpack.c.h.b16 %v75
    %v567 = vunpack.c.l.b16 %v76
    %v568 = vunpack.c.h.b16 %v76
    %v569 = vunpack.c.l.b16 %v77
    %v570 = vunpack.c.h.b16 %v77
    %v571 = vunpack.c.l.b16 %v78
    %v572 = vunpack.c.h.b16 %v78
    %v573 = vunpack.c.l.b16 %v79
    %v574 = vunpack.c.h.b16 %v79
    %v575 = vunpack.c.l.b16 %v80
    %v576 = vunpack.c.h.b16 %v80
    %v577 = vunpack.c.l.b16 %v81
    %v578 = vunpack.c.h.b16 %v81
    %v579 = vunpack.c.l.b16 %v82
    %v580 = vunpack.c.h.b16 %v82
    %v581 = vunpack.c.l.b16 %v83
    %v582 = vunpack.c.h.b16 %v83
    %v583 = vunpack.c.l.b16 %v84
    %v584 = vunpack.c.h.b16 %v84
    %v585 = vunpack.c.l.b16 %v85
    %v586 = vunpack.c.h.b16 %v85
    %v587 = vunpack.c.l.b16 %v86
    %v588 = vunpack.c.h.b16 %v86
    %v589 = vunpack.c.l.b16 %v87
    %v590 = vunpack.c.h.b16 %v87
    %v591 = vunpack.c.l.b16 %v88
    %v592 = vunpack.c.h.b16 %v88
    %v593 = vunpack.c.l.b16 %v89
    %v594 = vunpack.c.h.b16 %v89
    %v595 = vunpack.c.l.b16 %v90
    %v596 = vunpack.c.h.b16 %v90
    %v597 = vunpack.c.l.b16 %v91
    %v598 = vunpack.c.h.b16 %v91
    %v599 = vunpack.c.l.b16 %v92
    %v600 = vunpack.c.h.b16 %v92
    %v601 = vunpack.c.l.b16 %v93
    %v602 = vunpack.c.h.b16 %v93
    %v603 = vunpack.c.l.b16 %v94
    %v604 = vunpack.c.h.b16 %v94
    %v605 = vunpack.c.l.b16 %v95
    %v606 = vunpack.c.h.b16 %v95
    %v607 = vunpack.c.l.b16 %v96
    %v608 = vunpack.c.h.b16 %v96
    %v609 = vunpack.c.l.b16 %v97
    %v610 = vunpack.c.h.b16 %v97
    %v611 = vunpack.c.l.b16 %v98
    %v612 = vunpack.c.h.b16 %v98
    %v613 = vunpack.c.l.b16 %v99
    %v614 = vunpack.c.h.b16 %v99
    %v615 = vunpack.c.l.b16 %v100
    %v616 = vunpack.c.h.b16 %v100
    %v617 = vunpack.c.l.b16 %v101
    %v618 = vunpack.c.h.b16 %v101
    %v619 = vunpack.c.l.b16 %v102
    %v620 = vunpack.c.h.b16 %v102
    %v621 = vunpack.c.l.b16 %v103
    %v622 = vunpack.c.h.b16 %v103
    %v623 = vunpack.c.l.b16 %v104
    %v624 = vunpack.c.h.b16 %v104
    %v625 = vunpack.c.l.b16 %v105
    %v626 = vunpack.c.h.b16 %v105
    %v627 = vunpack.c.l.b16 %v106
    %v628 = vunpack.c.h.b16 %v106
    %v629 = vunpack.c.l.b16 %v107
    %v630 = vunpack.c.h.b16 %v107
    %v631 = vunpack.c.l.b16 %v108
    %v632 = vunpack.c.h.b16 %v108
    %v633 = vunpack.c.l.b16 %v109
    %v634 = vunpack.c.h.b16 %v109
    %v635 = vunpack.c.l.b16 %v110
    %v636 = vunpack.c.h.b16 %v110
    %v637 = vunpack.c.l.b16 %v111
    %v638 = vunpack.c.h.b16 %v111
    %v639 = vunpack.c.l.b16 %v112
    %v640 = vunpack.c.h.b16 %v112
    %v641 = vunpack.c.l.b16 %v113
    %v642 = vunpack.c.h.b16 %v113
    %v643 = vunpack.c.l.b16 %v114
    %v644 = vunpack.c.h.b16 %v114
    %v645 = vunpack.c.l.b16 %v115
    %v646 = vunpack.c.h.b16 %v115
    %v647 = vunpack.c.l.b16 %v116
    %v648 = vunpack.c.h.b16 %v116
    %v649 = vunpack.c.l.b16 %v117
    %v650 = vunpack.c.h.b16 %v117
    %v651 = vunpack.c.l.b16 %v118
    %v652 = vunpack.c.h.b16 %v118
    %v653 = vunpack.c.l.b16 %v119
    %v654 = vunpack.c.h.b16 %v119
    %v655 = vunpack.c.l.b16 %v120
    %v656 = vunpack.c.h.b16 %v120
    %v657 = vunpack.c.l.b16 %v121
    %v658 = vunpack.c.h.b16 %v121
    %v659 = vunpack.c.l.b16 %v122
    %v660 = vunpack.c.h.b16 %v122
    %v661 = vunpack.c.l.b16 %v123
    %v662 = vunpack.c.h.b16 %v123
    %v663 = vunpack.c.l.b16 %v124
    %v664 = vunpack.c.h.b16 %v124
    %v665 = vunpack.c.l.b16 %v125
    %v666 = vunpack.c.h.b16 %v125
    %v667 = vunpack.c.l.b16 %v126
    %v668 = vunpack.c.h.b16 %v126
    %v669 = vunpack.c.l.b16 %v127
    %v670 = vunpack.c.h.b16 %v127
    %v671 = vunpack.c.l.b16 %v128
    %v672 = vunpack.c.h.b16 %v128
    %v673 = vunpack.c.l.b16 %v129
    %v674 = vunpack.c.h.b16 %v129
    %v675 = vunpack.c.l.b16 %v130
    %v676 = vunpack.c.h.b16 %v130
    %v677 = vunpack.c.l.b16 %v131
    %v678 = vunpack.c.h.b16 %v131
    %v679 = vunpack.c.l.b16 %v132
    %v680 = vunpack.c.h.b16 %v132
    %v681 = vunpack.c.l.b16 %v133
    %v682 = vunpack.c.h.b16 %v133
    %v683 = vunpack.c.l.b16 %v134
    %v684 = vunpack.c.h.b16 %v134
    %v685 = vunpack.c.l.b16 %v135
    %v686 = vunpack.c.h.b16 %v135
    %v687 = vunpack.c.l.b16 %v136
    %v688 = vunpack.c.h.b16 %v136
    %v689 = vunpack.c.l.b16 %v137
    %v690 = vunpack.c.h.b16 %v137
    %v691 = vunpack.c.l.b16 %v138
    %v692 = vunpack.c.h.b16 %v138
    %v693 = vunpack.c.l.b16 %v139
    %v694 = vunpack.c.h.b16 %v139
    %v695 = vunpack.c.l.b16 %v140
    %v696 = vunpack.c.h.b16 %v140
    %v697 = vunpack.c.l.b16 %v141
    %v698 = vunpack.c.h.b16 %v141
    %v699 = vunpack.c.l.b16 %v142
    %v700 = vunpack.c.h.b16 %v142
    %v701 = vunpack.c.l.b16 %v143
    %v702 = vunpack.c.h.b16 %v143
    %v703 = vunpack.c.l.b16 %v144
    %v704 = vunpack.c.h.b16 %v144
    %v705 = vunpack.c.l.b16 %v145
    %v706 = vunpack.c.h.b16 %v145
    %v707 = vunpack.c.l.b16 %v146
    %v708 = vunpack.c.h.b16 %v146
    %v709 = vunpack.c.l.b16 %v147
    %v710 = vunpack.c.h.b16 %v147
    %v711 = vunpack.c.l.b16 %v148
    %v712 = vunpack.c.h.b16 %v148
    %v713 = vunpack.c.l.b16 %v149
    %v714 = vunpack.c.h.b16 %v149
    %v715 = vunpack.c.l.b16 %v150
    %v716 = vunpack.c.h.b16 %v150
    %v717 = vunpack.c.l.b16 %v151
    %v718 = vunpack.c.h.b16 %v151
    %v719 = vunpack.c.l.b16 %v152
    %v720 = vunpack.c.h.b16 %v152
    %v721 = vunpack.c.l.b16 %v153
    %v722 = vunpack.c.h.b16 %v153
    %v723 = vunpack.c.l.b16 %v154
    %v724 = vunpack.c.h.b16 %v154
    %v725 = vunpack.c.l.b16 %v155
    %v726 = vunpack.c.h.b16 %v155
    %v727 = vunpack.c.l.b16 %v156
    %v728 = vunpack.c.h.b16 %v156
    %v729 = vunpack.c.l.b16 %v157
    %v730 = vunpack.c.h.b16 %v157
    %v731 = vunpack.c.l.b16 %v158
    %v732 = vunpack.c.h.b16 %v158
    %v733 = vunpack.c.l.b16 %v159
    %v734 = vunpack.c.h.b16 %v159
    %v735 = vunpack.c.l.b16 %v160
    %v736 = vunpack.c.h.b16 %v160
    %v737 = vunpack.c.l.b16 %v161
    %v738 = vunpack.c.h.b16 %v161
    %v739 = vunpack.c.l.b16 %v162
    %v740 = vunpack.c.h.b16 %v162
    %v741 = vunpack.c.l.b16 %v163
    %v742 = vunpack.c.h.b16 %v163
    %v743 = vunpack.c.l.b16 %v164
    %v744 = vunpack.c.h.b16 %v164
    %v745 = vunpack.c.l.b16 %v165
    %v746 = vunpack.c.h.b16 %v165
    %v747 = vunpack.c.l.b16 %v166
    %v748 = vunpack.c.h.b16 %v166
    %v749 = vunpack.c.l.b16 %v167
    %v750 = vunpack.c.h.b16 %v167
    %v751 = vunpack.c.l.b16 %v168
    %v752 = vunpack.c.h.b16 %v168
    %v753 = vunpack.c.l.b16 %v169
    %v754 = vunpack.c.h.b16 %v169
    %v755 = vunpack.c.l.b16 %v170
    %v756 = vunpack.c.h.b16 %v170
    %v757 = vunpack.c.l.b16 %v171
    %v758 = vunpack.c.h.b16 %v171
    %v759 = vunpack.c.l.b16 %v172
    %v760 = vunpack.c.h.b16 %v172
    %v761 = vunpack.c.l.b16 %v173
    %v762 = vunpack.c.h.b16 %v173
    %v763 = vunpack.c.l.b16 %v174
    %v764 = vunpack.c.h.b16 %v174
    %v765 = vunpack.c.l.b16 %v175
    %v766 = vunpack.c.h.b16 %v175
    %v767 = vunpack.c.l.b16 %v176
    %v768 = vunpack.c.h.b16 %v176
    %v769 = vunpack.c.l.b16 %v177
    %v770 = vunpack.c.h.b16 %v177
    %v771 = vunpack.c.l.b16 %v178
    %v772 = vunpack.c.h.b16 %v178
    %v773 = vunpack.c.l.b16 %v179
    %v774 = vunpack.c.h.b16 %v179
    %v775 = vunpack.c.l.b16 %v180
    %v776 = vunpack.c.h.b16 %v180
    %v777 = vunpack.c.l.b16 %v181
    %v778 = vunpack.c.h.b16 %v181
    %v779 = vunpack.c.l.b16 %v182
    %v780 = vunpack.c.h.b16 %v182
    %v781 = vunpack.c.l.b16 %v183
    %v782 = vunpack.c.h.b16 %v183
    %v783 = vunpack.c.l.b16 %v184
    %v784 = vunpack.c.h.b16 %v184
    %v785 = vunpack.c.l.b16 %v185
    %v786 = vunpack.c.h.b16 %v185
    %v787 = vunpack.c.l.b16 %v186
    %v788 = vunpack.c.h.b16 %v186
    %v789 = vunpack.c.l.b16 %v187
    %v790 = vunpack.c.h.b16 %v187
    %v791 = vunpack.c.l.b16 %v188
    %v792 = vunpack.c.h.b16 %v188
    %v793 = vunpack.c.l.b16 %v189
    %v794 = vunpack.c.h.b16 %v189
    %v795 = vunpack.c.l.b16 %v190
    %v796 = vunpack.c.h.b16 %v190
    %v797 = vunpack.c.l.b16 %v191
    %v798 = vunpack.c.h.b16 %v191
    %v799 = vunpack.c.l.b16 %v192
    %v800 = vunpack.c.h.b16 %v192
    %v801 = vunpack.c.l.b16 %v193
    %v802 = vunpack.c.h.b16 %v193
    %v803 = vunpack.c.l.b16 %v194
    %v804 = vunpack.c.h.b16 %v194
    %v805 = vunpack.c.l.b16 %v195
    %v806 = vunpack.c.h.b16 %v195
    %v807 = vunpack.c.l.b16 %v196
    %v808 = vunpack.c.h.b16 %v196
    %v809 = vunpack.c.l.b16 %v197
    %v810 = vunpack.c.h.b16 %v197
    %v811 = vunpack.c.l.b16 %v198
    %v812 = vunpack.c.h.b16 %v198
    %v813 = vunpack.c.l.b16 %v199
    %v814 = vunpack.c.h.b16 %v199
    %v815 = vunpack.c.l.b16 %v200
    %v816 = vunpack.c.h.b16 %v200
    %v817 = vunpack.c.l.b16 %v201
    %v818 = vunpack.c.h.b16 %v201
    %v819 = vunpack.c.l.b16 %v202
    %v820 = vunpack.c.h.b16 %v202
    %v821 = vunpack.c.l.b16 %v203
    %v822 = vunpack.c.h.b16 %v203
    %v823 = vunpack.c.l.b16 %v204
    %v824 = vunpack.c.h.b16 %v204
    %v825 = vunpack.c.l.b16 %v205
    %v826 = vunpack.c.h.b16 %v205
    %v827 = vunpack.c.l.b16 %v206
    %v828 = vunpack.c.h.b16 %v206
    %v829 = vunpack.c.l.b16 %v207
    %v830 = vunpack.c.h.b16 %v207
    %v831 = vunpack.c.l.b16 %v208
    %v832 = vunpack.c.h.b16 %v208
    %v833 = vunpack.c.l.b16 %v209
    %v834 = vunpack.c.h.b16 %v209
    %v835 = vunpack.c.l.b16 %v210
    %v836 = vunpack.c.h.b16 %v210
    %v837 = vunpack.c.l.b16 %v211
    %v838 = vunpack.c.h.b16 %v211
    %v839 = vunpack.c.l.b16 %v212
    %v840 = vunpack.c.h.b16 %v212
    %v841 = vunpack.c.l.b16 %v213
    %v842 = vunpack.c.h.b16 %v213
    %v843 = vunpack.c.l.b16 %v214
    %v844 = vunpack.c.h.b16 %v214
    %v845 = vunpack.c.l.b16 %v215
    %v846 = vunpack.c.h.b16 %v215
    %v847 = vunpack.c.l.b16 %v216
    %v848 = vunpack.c.h.b16 %v216
    %v849 = vunpack.c.l.b16 %v217
    %v850 = vunpack.c.h.b16 %v217
    %v851 = vunpack.c.l.b16 %v218
    %v852 = vunpack.c.h.b16 %v218
    %v853 = vunpack.c.l.b16 %v219
    %v854 = vunpack.c.h.b16 %v219
    %v855 = vunpack.c.l.b16 %v220
    %v856 = vunpack.c.h.b16 %v220
    %v857 = vunpack.c.l.b16 %v221
    %v858 = vunpack.c.h.b16 %v221
    %v859 = vunpack.c.l.b16 %v222
    %v860 = vunpack.c.h.b16 %v222
    %v861 = vunpack.c.l.b16 %v223
    %v862 = vunpack.c.h.b16 %v223
    %v863 = vunpack.c.l.b16 %v224
    %v864 = vunpack.c.h.b16 %v224
    %v865 = vunpack.c.l.b16 %v225
    %v866 = vunpack.c.h.b16 %v225
    %v867 = vunpack.c.l.b16 %v226
    %v868 = vunpack.c.h.b16 %v226
    %v869 = vunpack.c.l.b16 %v227
    %v870 = vunpack.c.h.b16 %v227
    %v871 = vunpack.c.l.b16 %v228
    %v872 = vunpack.c.h.b16 %v228
    %v873 = vunpack.c.l.b16 %v229
    %v874 = vunpack.c.h.b16 %v229
    %v875 = vunpack.c.l.b16 %v230
    %v876 = vunpack.c.h.b16 %v230
    %v877 = vunpack.c.l.b16 %v231
    %v878 = vunpack.c.h.b16 %v231
    %v879 = vunpack.c.l.b16 %v232
    %v880 = vunpack.c.h.b16 %v232
    %v881 = vunpack.c.l.b16 %v233
    %v882 = vunpack.c.h.b16 %v233
    %v883 = vunpack.c.l.b16 %v234
    %v884 = vunpack.c.h.b16 %v234
    %v885 = vunpack.c.l.b16 %v235
    %v886 = vunpack.c.h.b16 %v235
    %v887 = vunpack.c.l.b16 %v236
    %v888 = vunpack.c.h.b16 %v236
    %v889 = vunpack.c.l.b16 %v237
    %v890 = vunpack.c.h.b16 %v237
    %v891 = vunpack.c.l.b16 %v238
    %v892 = vunpack.c.h.b16 %v238
    %v893 = vunpack.c.l.b16 %v239
    %v894 = vunpack.c.h.b16 %v239
    %v895 = vunpack.c.l.b16 %v240
    %v896 = vunpack.c.h.b16 %v240
    %v897 = vunpack.c.l.b16 %v241
    %v898 = vunpack.c.h.b16 %v241
    %v899 = vpack.c.b16 %v503, %v499
    %v900 = vpack.c.b16 %v504, %v500
    %v901 = vpack.c.b16 %v505, %v501
    %v902 = vpack.c.b16 %v506, %v502
    %v903 = vpack.c.b16 %v511, %v507
    %v904 = vpack.c.b16 %v512, %v508
    %v905 = vpack.c.b16 %v513, %v509
    %v906 = vpack.c.b16 %v514, %v510
    %v907 = vpack.c.b16 %v519, %v515
    %v908 = vpack.c.b16 %v520, %v516
    %v909 = vpack.c.b16 %v521, %v517
    %v910 = vpack.c.b16 %v522, %v518
    %v911 = vpack.c.b16 %v527, %v523
    %v912 = vpack.c.b16 %v528, %v524
    %v913 = vpack.c.b16 %v529, %v525
    %v914 = vpack.c.b16 %v530, %v526
    %v915 = vpack.c.b16 %v535, %v531
    %v916 = vpack.c.b16 %v536, %v532
    %v917 = vpack.c.b16 %v537, %v533
    %v918 = vpack.c.b16 %v538, %v534
    %v919 = vpack.c.b16 %v543, %v539
    %v920 = vpack.c.b16 %v544, %v540
    %v921 = vpack.c.b16 %v545, %v541
    %v922 = vpack.c.b16 %v546, %v542
    %v923 = vpack.c.b16 %v551, %v547
    %v924 = vpack.c.b16 %v552, %v548
    %v925 = vpack.c.b16 %v553, %v549
    %v926 = vpack.c.b16 %v554, %v550
    %v927 = vpack.c.b16 %v559, %v555
    %v928 = vpack.c.b16 %v560, %v556
    %v929 = vpack.c.b16 %v561, %v557
    %v930 = vpack.c.b16 %v562, %v558
    %v931 = vpack.c.b16 %v567, %v563
    %v932 = vpack.c.b16 %v568, %v564
    %v933 = vpack.c.b16 %v569, %v565
    %v934 = vpack.c.b16 %v570, %v566
    %v935 = vpack.c.b16 %v575, %v571
    %v936 = vpack.c.b16 %v576, %v572
    %v937 = vpack.c.b16 %v577, %v573
    %v938 = vpack.c.b16 %v578, %v574
    %v939 = vpack.c.b16 %v583, %v579
    %v940 = vpack.c.b16 %v584, %v580
    %v941 = vpack.c.b16 %v585, %v581
    %v942 = vpack.c.b16 %v586, %v582
    %v943 = vpack.c.b16 %v591, %v587
    %v944 = vpack.c.b16 %v592, %v588
    %v945 = vpack.c.b16 %v593, %v589
    %v946 = vpack.c.b16 %v594, %v590
    %v947 = vpack.c.b16 %v599, %v595
    %v948 = vpack.c.b16 %v600, %v596
    %v949 = vpack.c.b16 %v601, %v597
    %v950 = vpack.c.b16 %v602, %v598
    %v951 = vpack.c.b16 %v607, %v603
    %v952 = vpack.c.b16 %v608, %v604
    %v953 = vpack.c.b16 %v609, %v605
    %v954 = vpack.c.b16 %v610, %v606
    %v955 = vpack.c.b16 %v615, %v611
    %v956 = vpack.c.b16 %v616, %v612
    %v957 = vpack.c.b16 %v617, %v613
    %v958 = vpack.c.b16 %v618, %v614
    %v959 = vpack.c.b16 %v623, %v619
    %v960 = vpack.c.b16 %v624, %v620
    %v961 = vpack.c.b16 %v625, %v621
    %v962 = vpack.c.b16 %v626, %v622
    %v963 = vpack.c.b16 %v631, %v627
    %v964 = vpack.c.b16 %v632, %v628
    %v965 = vpack.c.b16 %v633, %v629
    %v966 = vpack.c.b16 %v634, %v630
    %v967 = vpack.c.b16 %v639, %v635
    %v968 = vpack.c.b16 %v640, %v636
    %v969 = vpack.c.b16 %v641, %v637
    %v970 = vpack.c.b16 %v642, %v638
    %v971 = vpack.c.b16 %v647, %v643
    %v972 = vpack.c.b16 %v648, %v644
    %v973 = vpack.c.b16 %v649, %v645
    %v974 = vpack.c.b16 %v650, %v646
    %v975 = vpack.c.b16 %v655, %v651
    %v976 = vpack.c.b16 %v656, %v652
    %v977 = vpack.c.b16 %v657, %v653
    %v978 = vpack.c.b16 %v658, %v654
    %v979 = vpack.c.b16 %v663, %v659
    %v980 = vpack.c.b16 %v664, %v660
    %v981 = vpack.c.b16 %v665, %v661
    %v982 = vpack.c.b16 %v666, %v662
    %v983 = vpack.c.b16 %v671, %v667
    %v984 = vpack.c.b16 %v672, %v668
    %v985 = vpack.c.b16 %v673, %v669
    %v986 = vpack.c.b16 %v674, %v670
    %v987 = vpack.c.b16 %v679, %v675
    %v988 = vpack.c.b16 %v680, %v676
    %v989 = vpack.c.b16 %v681, %v677
    %v990 = vpack.c.b16 %v682, %v678
    %v991 = vpack.c.b16 %v687, %v683
    %v992 = vpack.c.b16 %v688, %v684
    %v993 = vpack.c.b16 %v689, %v685
    %v994 = vpack.c.b16 %v690, %v686
    %v995 = vpack.c.b16 %v695, %v691
    %v996 = vpack.c.b16 %v696, %v692
    %v997 = vpack.c.b16 %v697, %v693
    %v998 = vpack.c.b16 %v698, %v694
    %v999 = vpack.c.b16 %v703, %v699
    %v1000 = vpack.c.b16 %v704, %v700
    %v1001 = vpack.c.b16 %v705, %v701
    %v1002 = vpack.c.b16 %v706, %v702
    %v1003 = vpack.c.b16 %v711, %v707
    %v1004 = vpack.c.b16 %v712, %v708
    %v1005 = vpack.c.b16 %v713, %v709
    %v1006 = vpack.c.b16 %v714, %v710
    %v1007 = vpack.c.b16 %v719, %v715
    %v1008 = vpack.c.b16 %v720, %v716
    %v1009 = vpack.c.b16 %v721, %v717
    %v1010 = vpack.c.b16 %v722, %v718
    %v1011 = vpack.c.b16 %v727, %v723
    %v1012 = vpack.c.b16 %v728, %v724
    %v1013 = vpack.c.b16 %v729, %v725
    %v1014 = vpack.c.b16 %v730, %v726
    %v1015 = vpack.c.b16 %v735, %v731
    %v1016 = vpack.c.b16 %v736, %v732
    %v1017 = vpack.c.b16 %v737, %v733
    %v1018 = vpack.c.b16 %v738, %v734
    %v1019 = vpack.c.b16 %v743, %v739
    %v1020 = vpack.c.b16 %v744, %v740
    %v1021 = vpack.c.b16 %v745, %v741
    %v1022 = vpack.c.b16 %v746, %v742
    %v1023 = vpack.c.b16 %v751, %v747
    %v1024 = vpack.c.b16 %v752, %v748
    %v1025 = vpack.c.b16 %v753, %v749
    %v1026 = vpack.c.b16 %v754, %v750
    %v1027 = vpack.c.b16 %v759, %v755
    %v1028 = vpack.c.b16 %v760, %v756
    %v1029 = vpack.c.b16 %v761, %v757
    %v1030 = vpack.c.b16 %v762, %v758
    %v1031 = vpack.c.b16 %v767, %v763
    %v1032 = vpack.c.b16 %v768, %v764
    %v1033 = vpack.c.b16 %v769, %v765
    %v1034 = vpack.c.b16 %v770, %v766
    %v1035 = vpack.c.b16 %v775, %v771
    %v1036 = vpack.c.b16 %v776, %v772
    %v1037 = vpack.c.b16 %v777, %v773
    %v1038 = vpack.c.b16 %v778, %v774
    %v1039 = vpack.c.b16 %v783, %v779
    %v1040 = vpack.c.b16 %v784, %v780
    %v1041 = vpack.c.b16 %v785, %v781
    %v1042 = vpack.c.b16 %v786, %v782
    %v1043 = vpack.c.b16 %v791, %v787
    %v1044 = vpack.c.b16 %v792, %v788
    %v1045 = vpack.c.b16 %v793, %v789
    %v1046 = vpack.c.b16 %v794, %v790
    %v1047 = vpack.c.b16 %v799, %v795
    %v1048 = vpack.c.b16 %v800, %v796
    %v1049 = vpack.c.b16 %v801, %v797
    %v1050 = vpack.c.b16 %v802, %v798
    %v1051 = vpack.c.b16 %v807, %v803
    %v1052 = vpack.c.b16 %v808, %v804
    %v1053 = vpack.c.b16 %v809, %v805
    %v1054 = vpack.c.b16 %v810, %v806
    %v1055 = vpack.c.b16 %v815, %v811
    %v1056 = vpack.c.b16 %v816, %v812
    %v1057 = vpack.c.b16 %v817, %v813
    %v1058 = vpack.c.b16 %v818, %v814
    %v1059 = vpack.c.b16 %v823, %v819
    %v1060 = vpack.c.b16 %v824, %v820
    %v1061 = vpack.c.b16 %v825, %v821
    %v1062 = vpack.c.b16 %v826, %v822
    %v1063 = vpack.c.b16 %v831, %v827
    %v1064 = vpack.c.b16 %v832, %v828
    %v1065 = vpack.c.b16 %v833, %v829
    %v1066 = vpack.c.b16 %v834, %v830
    %v1067 = vpack.c.b16 %v839, %v835
    %v1068 = vpack.c.b16 %v840, %v836
    %v1069 = vpack.c.b16 %v841, %v837
    %v1070 = vpack.c.b16 %v842, %v838
    %v1071 = vpack.c.b16 %v847, %v843
    %v1072 = vpack.c.b16 %v848, %v844
    %v1073 = vpack.c.b16 %v849, %v845
    %v1074 = vpack.c.b16 %v850, %v846
    %v1075 = vpack.c.b16 %v855, %v851
    %v1076 = vpack.c.b16 %v856, %v852
    %v1077 = vpack.c.b16 %v857, %v853
    %v1078 = vpack.c.b16 %v858, %v854
    %v1079 = vpack.c.b16 %v863, %v859
    %v1080 = vpack.c.b16 %v864, %v860
    %v1081 = vpack.c.b16 %v865, %v861
    %v1082 = vpack.c.b16 %v866, %v862
    %v1083 = vpack.c.b16 %v871, %v867
    %v1084 = vpack.c.b16 %v872, %v868
    %v1085 = vpack.c.b16 %v873, %v869
    %v1086 = vpack.c.b16 %v874, %v870
    %v1087 = vpack.c.b16 %v879, %v875
    %v1088 = vpack.c.b16 %v880, %v876
    %v1089 = vpack.c.b16 %v881, %v877
    %v1090 = vpack.c.b16 %v882, %v878
    %v1091 = vpack.c.b16 %v887, %v883
    %v1092 = vpack.c.b16 %v888, %v884
    %v1093 = vpack.c.b16 %v889, %v885
    %v1094 = vpack.c.b16 %v890, %v886
    %v1095 = vpack.c.b16 %v895, %v891
    %v1096 = vpack.c.b16 %v896, %v892
    %v1097 = vpack.c.b16 %v897, %v893
    %v1098 = vpack.c.b16 %v898, %v894
    %vm1299 = vcmask 261120
    %v1301 = vsel %vm1299, %v292, 0
    %1303 = vmatprep.subr.bf16.mxu0 %v928
    %1304 = vmatpush1.bf16.msra.mxu0 %v927
    %1305 = vmatprep.subr.bf16.mxu0 %v924
    %1306 = vmatpush1.bf16.msra.mxu0 %v923
    %1307 = vmatprep.subr.bf16.mxu0 %v920
    %1308 = vmatpush1.bf16.msra.mxu0 %v919
    %1309 = vmatprep.subr.bf16.mxu0 %v916
    %1310 = vmatpush1.bf16.msra.mxu0 %v915
    %1311 = vmatprep.subr.bf16.mxu0 %v912
    %1312 = vmatpush1.bf16.msra.mxu0 %v911
    %1313 = vmatprep.subr.bf16.mxu0 %v908
    %1314 = vmatpush1.bf16.msra.mxu0 %v907
    %1315 = vmatprep.subr.bf16.mxu0 %v904
    %1316 = vmatpush1.bf16.msra.mxu0 %v903
    %1317 = vmatprep.subr.bf16.mxu0 %v900
    %1318 = vmatpush1.bf16.msra.mxu0 %v899
    %1319 = vmatprep.subr.bf16.mxu0 %v960
    %1320 = vmatpush2.bf16.msra.mxu0 %v959
    %1321 = vmatprep.subr.bf16.mxu0 %v956
    %1322 = vmatpush2.bf16.msra.mxu0 %v955
    %1323 = vmatprep.subr.bf16.mxu0 %v952
    %1324 = vmatpush2.bf16.msra.mxu0 %v951
    %1325 = vmatprep.subr.bf16.mxu0 %v948
    %1326 = vmatpush2.bf16.msra.mxu0 %v947
    %1327 = vmatprep.subr.bf16.mxu0 %v944
    %1328 = vmatpush2.bf16.msra.mxu0 %v943
    %1329 = vmatprep.subr.bf16.mxu0 %v940
    %1330 = vmatpush2.bf16.msra.mxu0 %v939
    %1331 = vmatprep.subr.bf16.mxu0 %v936
    %1332 = vmatpush2.bf16.msra.mxu0 %v935
    %1333 = vmatprep.subr.bf16.mxu0 %v932
    %1334 = vmatpush2.bf16.msra.mxu0 %v931
    %1335 = vmatprep.mubr.bf16.mxu0 %v287
    %1336 = vmatmul.mubr.bf16.gmra.mxu0 %v286
    %v1337 = vpop.f32.mrf.mxu0
    %v1338 = vadd.f32 %v247, %v1337
    %v1339 = vpop.f32.mrf.mxu0
    %v1340 = vadd.f32 %v251, %v1339
    %v1341 = vpop.f32.mrf.mxu0
    %v1342 = vadd.f32 %v247, %v1341
    %v1343 = vpop.f32.mrf.mxu0
    %v1344 = vadd.f32 %v251, %v1343
    %1345 = vdwg.mxu0
    %1346 = vmatprep.subr.bf16.mxu0 %v992
    %1347 = vmatpush1.bf16.msra.mxu0 %v991
    %1348 = vmatprep.subr.bf16.mxu0 %v988
    %1349 = vmatpush1.bf16.msra.mxu0 %v987
    %1350 = vmatprep.subr.bf16.mxu0 %v984
    %1351 = vmatpush1.bf16.msra.mxu0 %v983
    %1352 = vmatprep.subr.bf16.mxu0 %v980
    %1353 = vmatpush1.bf16.msra.mxu0 %v979
    %1354 = vmatprep.subr.bf16.mxu0 %v976
    %1355 = vmatpush1.bf16.msra.mxu0 %v975
    %1356 = vmatprep.subr.bf16.mxu0 %v972
    %1357 = vmatpush1.bf16.msra.mxu0 %v971
    %1358 = vmatprep.subr.bf16.mxu0 %v968
    %1359 = vmatpush1.bf16.msra.mxu0 %v967
    %1360 = vmatprep.subr.bf16.mxu0 %v964
    %1361 = vmatpush1.bf16.msra.mxu0 %v963
    %1362 = vmatprep.subr.bf16.mxu0 %v1024
    %1363 = vmatpush2.bf16.msra.mxu0 %v1023
    %1364 = vmatprep.subr.bf16.mxu0 %v1020
    %1365 = vmatpush2.bf16.msra.mxu0 %v1019
    %1366 = vmatprep.subr.bf16.mxu0 %v1016
    %1367 = vmatpush2.bf16.msra.mxu0 %v1015
    %1368 = vmatprep.subr.bf16.mxu0 %v1012
    %1369 = vmatpush2.bf16.msra.mxu0 %v1011
    %1370 = vmatprep.subr.bf16.mxu0 %v1008
    %1371 = vmatpush2.bf16.msra.mxu0 %v1007
    %1372 = vmatprep.subr.bf16.mxu0 %v1004
    %1373 = vmatpush2.bf16.msra.mxu0 %v1003
    %1374 = vmatprep.subr.bf16.mxu0 %v1000
    %1375 = vmatpush2.bf16.msra.mxu0 %v999
    %1376 = vmatprep.subr.bf16.mxu0 %v996
    %1377 = vmatpush2.bf16.msra.mxu0 %v995
    %1378 = vmatprep.mubr.bf16.mxu0 %v289
    %1379 = vmatmul.mubr.bf16.gmra.mxu0 %v288
    %v1380 = vpop.f32.mrf.mxu0
    %v1381 = vadd.f32 %v1338, %v1380
    %v1382 = vpop.f32.mrf.mxu0
    %v1383 = vadd.f32 %v1340, %v1382
    %v1384 = vpop.f32.mrf.mxu0
    %v1385 = vadd.f32 %v1342, %v1384
    %v1386 = vpop.f32.mrf.mxu0
    %v1387 = vadd.f32 %v1344, %v1386
    %1388 = vdwg.mxu0
    %1389 = vmatprep.subr.bf16.mxu0 %v1056
    %1390 = vmatpush1.bf16.msra.mxu0 %v1055
    %1391 = vmatprep.subr.bf16.mxu0 %v1052
    %1392 = vmatpush1.bf16.msra.mxu0 %v1051
    %1393 = vmatprep.subr.bf16.mxu0 %v1048
    %1394 = vmatpush1.bf16.msra.mxu0 %v1047
    %1395 = vmatprep.subr.bf16.mxu0 %v1044
    %1396 = vmatpush1.bf16.msra.mxu0 %v1043
    %1397 = vmatprep.subr.bf16.mxu0 %v1040
    %1398 = vmatpush1.bf16.msra.mxu0 %v1039
    %1399 = vmatprep.subr.bf16.mxu0 %v1036
    %1400 = vmatpush1.bf16.msra.mxu0 %v1035
    %1401 = vmatprep.subr.bf16.mxu0 %v1032
    %1402 = vmatpush1.bf16.msra.mxu0 %v1031
    %1403 = vmatprep.subr.bf16.mxu0 %v1028
    %1404 = vmatpush1.bf16.msra.mxu0 %v1027
    %1405 = vmatprep.subr.bf16.mxu0 %v1088
    %1406 = vmatpush2.bf16.msra.mxu0 %v1087
    %1407 = vmatprep.subr.bf16.mxu0 %v1084
    %1408 = vmatpush2.bf16.msra.mxu0 %v1083
    %1409 = vmatprep.subr.bf16.mxu0 %v1080
    %1410 = vmatpush2.bf16.msra.mxu0 %v1079
    %1411 = vmatprep.subr.bf16.mxu0 %v1076
    %1412 = vmatpush2.bf16.msra.mxu0 %v1075
    %1413 = vmatprep.subr.bf16.mxu0 %v1072
    %1414 = vmatpush2.bf16.msra.mxu0 %v1071
    %1415 = vmatprep.subr.bf16.mxu0 %v1068
    %1416 = vmatpush2.bf16.msra.mxu0 %v1067
    %1417 = vmatprep.subr.bf16.mxu0 %v1064
    %1418 = vmatpush2.bf16.msra.mxu0 %v1063
    %1419 = vmatprep.subr.bf16.mxu0 %v1060
    %1420 = vmatpush2.bf16.msra.mxu0 %v1059
    %1421 = vmatprep.mubr.bf16.mxu0 %v291
    %1422 = vmatmul.mubr.bf16.gmra.mxu0 %v290
    %v1423 = vpop.f32.mrf.mxu0
    %v1424 = vadd.f32 %v1381, %v1423
    %v1425 = vpop.f32.mrf.mxu0
    %v1426 = vadd.f32 %v1383, %v1425
    %v1427 = vpop.f32.mrf.mxu0
    %v1428 = vadd.f32 %v1385, %v1427
    %v1429 = vpop.f32.mrf.mxu0
    %v1430 = vadd.f32 %v1387, %v1429
    %1431 = vdwg.mxu0
    %1432 = vmatprep.subr.bf16.mxu0 0
    %1433 = vmatpush1.bf16.msra.mxu0 0
    %1434 = vmatprep.subr.bf16.mxu0 0
    %1435 = vmatpush1.bf16.msra.mxu0 0
    %1436 = vmatprep.subr.bf16.mxu0 0
    %1437 = vmatpush1.bf16.msra.mxu0 0
    %1438 = vmatprep.subr.bf16.mxu0 0
    %1439 = vmatpush1.bf16.msra.mxu0 0
    %1440 = vmatprep.subr.bf16.mxu0 0
    %1441 = vmatpush1.bf16.msra.mxu0 0
    %1442 = vmatprep.subr.bf16.mxu0 0
    %1443 = vmatpush1.bf16.msra.mxu0 0
    %1444 = vmatprep.subr.bf16.mxu0 %v1096
    %1445 = vmatpush1.bf16.msra.mxu0 %v1095
    %1446 = vmatprep.subr.bf16.mxu0 %v1092
    %1447 = vmatpush1.bf16.msra.mxu0 %v1091
    %1448 = vmatprep.subr.bf16.mxu0 0
    %1449 = vmatpush2.bf16.msra.mxu0 0
    %1450 = vmatprep.subr.bf16.mxu0 0
    %1451 = vmatpush2.bf16.msra.mxu0 0
    %1452 = vmatprep.subr.bf16.mxu0 0
    %1453 = vmatpush2.bf16.msra.mxu0 0
    %1454 = vmatprep.subr.bf16.mxu0 0
    %1455 = vmatpush2.bf16.msra.mxu0 0
    %1456 = vmatprep.subr.bf16.mxu0 0
    %1457 = vmatpush2.bf16.msra.mxu0 0
    %1458 = vmatprep.subr.bf16.mxu0 0
    %1459 = vmatpush2.bf16.msra.mxu0 0
    %1460 = vmatprep.subr.bf16.mxu0 0
    %1461 = vmatpush2.bf16.msra.mxu0 0
    %1462 = vmatprep.subr.bf16.mxu0 0
    %1463 = vmatpush2.bf16.msra.mxu0 0
    %1464 = vmatprep.mubr.bf16.mxu0 0
    %1465 = vmatmul.mubr.bf16.gmra.mxu0 %v1301
    %v1466 = vpop.f32.mrf.mxu0
    %v1467 = vadd.f32 %v1424, %v1466
    %v1468 = vpop.f32.mrf.mxu0
    %v1469 = vadd.f32 %v1426, %v1468
    %v1470 = vpop.f32.mrf.mxu0
    %v1471 = vadd.f32 %v1428, %v1470
    %v1472 = vpop.f32.mrf.mxu0
    %v1473 = vadd.f32 %v1430, %v1472
    %1474 = vdwg.mxu0
    %1475 = vmatprep.subr.bf16.mxu0 %v930
    %1476 = vmatpush1.bf16.msra.mxu0 %v929
    %1477 = vmatprep.subr.bf16.mxu0 %v926
    %1478 = vmatpush1.bf16.msra.mxu0 %v925
    %1479 = vmatprep.subr.bf16.mxu0 %v922
    %1480 = vmatpush1.bf16.msra.mxu0 %v921
    %1481 = vmatprep.subr.bf16.mxu0 %v918
    %1482 = vmatpush1.bf16.msra.mxu0 %v917
    %1483 = vmatprep.subr.bf16.mxu0 %v914
    %1484 = vmatpush1.bf16.msra.mxu0 %v913
    %1485 = vmatprep.subr.bf16.mxu0 %v910
    %1486 = vmatpush1.bf16.msra.mxu0 %v909
    %1487 = vmatprep.subr.bf16.mxu0 %v906
    %1488 = vmatpush1.bf16.msra.mxu0 %v905
    %1489 = vmatprep.subr.bf16.mxu0 %v902
    %1490 = vmatpush1.bf16.msra.mxu0 %v901
    %1491 = vmatprep.subr.bf16.mxu0 %v962
    %1492 = vmatpush2.bf16.msra.mxu0 %v961
    %1493 = vmatprep.subr.bf16.mxu0 %v958
    %1494 = vmatpush2.bf16.msra.mxu0 %v957
    %1495 = vmatprep.subr.bf16.mxu0 %v954
    %1496 = vmatpush2.bf16.msra.mxu0 %v953
    %1497 = vmatprep.subr.bf16.mxu0 %v950
    %1498 = vmatpush2.bf16.msra.mxu0 %v949
    %1499 = vmatprep.subr.bf16.mxu0 %v946
    %1500 = vmatpush2.bf16.msra.mxu0 %v945
    %1501 = vmatprep.subr.bf16.mxu0 %v942
    %1502 = vmatpush2.bf16.msra.mxu0 %v941
    %1503 = vmatprep.subr.bf16.mxu0 %v938
    %1504 = vmatpush2.bf16.msra.mxu0 %v937
    %1505 = vmatprep.subr.bf16.mxu0 %v934
    %1506 = vmatpush2.bf16.msra.mxu0 %v933
    %1507 = vmatprep.mubr.bf16.mxu0 %v287
    %1508 = vmatmul.mubr.bf16.gmra.mxu0 %v286
    %v1509 = vpop.f32.mrf.mxu0
    %v1510 = vadd.f32 %v255, %v1509
    %v1511 = vpop.f32.mrf.mxu0
    %v1512 = vadd.f32 %v259, %v1511
    %v1513 = vpop.f32.mrf.mxu0
    %v1514 = vadd.f32 %v255, %v1513
    %v1515 = vpop.f32.mrf.mxu0
    %v1516 = vadd.f32 %v259, %v1515
    %1517 = vdwg.mxu0
    %1518 = vmatprep.subr.bf16.mxu0 %v994
    %1519 = vmatpush1.bf16.msra.mxu0 %v993
    %1520 = vmatprep.subr.bf16.mxu0 %v990
    %1521 = vmatpush1.bf16.msra.mxu0 %v989
    %1522 = vmatprep.subr.bf16.mxu0 %v986
    %1523 = vmatpush1.bf16.msra.mxu0 %v985
    %1524 = vmatprep.subr.bf16.mxu0 %v982
    %1525 = vmatpush1.bf16.msra.mxu0 %v981
    %1526 = vmatprep.subr.bf16.mxu0 %v978
    %1527 = vmatpush1.bf16.msra.mxu0 %v977
    %1528 = vmatprep.subr.bf16.mxu0 %v974
    %1529 = vmatpush1.bf16.msra.mxu0 %v973
    %1530 = vmatprep.subr.bf16.mxu0 %v970
    %1531 = vmatpush1.bf16.msra.mxu0 %v969
    %1532 = vmatprep.subr.bf16.mxu0 %v966
    %1533 = vmatpush1.bf16.msra.mxu0 %v965
    %1534 = vmatprep.subr.bf16.mxu0 %v1026
    %1535 = vmatpush2.bf16.msra.mxu0 %v1025
    %1536 = vmatprep.subr.bf16.mxu0 %v1022
    %1537 = vmatpush2.bf16.msra.mxu0 %v1021
    %1538 = vmatprep.subr.bf16.mxu0 %v1018
    %1539 = vmatpush2.bf16.msra.mxu0 %v1017
    %1540 = vmatprep.subr.bf16.mxu0 %v1014
    %1541 = vmatpush2.bf16.msra.mxu0 %v1013
    %1542 = vmatprep.subr.bf16.mxu0 %v1010
    %1543 = vmatpush2.bf16.msra.mxu0 %v1009
    %1544 = vmatprep.subr.bf16.mxu0 %v1006
    %1545 = vmatpush2.bf16.msra.mxu0 %v1005
    %1546 = vmatprep.subr.bf16.mxu0 %v1002
    %1547 = vmatpush2.bf16.msra.mxu0 %v1001
    %1548 = vmatprep.subr.bf16.mxu0 %v998
    %1549 = vmatpush2.bf16.msra.mxu0 %v997
    %1550 = vmatprep.mubr.bf16.mxu0 %v289
    %1551 = vmatmul.mubr.bf16.gmra.mxu0 %v288
    %v1552 = vpop.f32.mrf.mxu0
    %v1553 = vadd.f32 %v1510, %v1552
    %v1554 = vpop.f32.mrf.mxu0
    %v1555 = vadd.f32 %v1512, %v1554
    %v1556 = vpop.f32.mrf.mxu0
    %v1557 = vadd.f32 %v1514, %v1556
    %v1558 = vpop.f32.mrf.mxu0
    %v1559 = vadd.f32 %v1516, %v1558
    %1560 = vdwg.mxu0
    %1561 = vmatprep.subr.bf16.mxu0 %v1058
    %1562 = vmatpush1.bf16.msra.mxu0 %v1057
    %1563 = vmatprep.subr.bf16.mxu0 %v1054
    %1564 = vmatpush1.bf16.msra.mxu0 %v1053
    %1565 = vmatprep.subr.bf16.mxu0 %v1050
    %1566 = vmatpush1.bf16.msra.mxu0 %v1049
    %1567 = vmatprep.subr.bf16.mxu0 %v1046
    %1568 = vmatpush1.bf16.msra.mxu0 %v1045
    %1569 = vmatprep.subr.bf16.mxu0 %v1042
    %1570 = vmatpush1.bf16.msra.mxu0 %v1041
    %1571 = vmatprep.subr.bf16.mxu0 %v1038
    %1572 = vmatpush1.bf16.msra.mxu0 %v1037
    %1573 = vmatprep.subr.bf16.mxu0 %v1034
    %1574 = vmatpush1.bf16.msra.mxu0 %v1033
    %1575 = vmatprep.subr.bf16.mxu0 %v1030
    %1576 = vmatpush1.bf16.msra.mxu0 %v1029
    %1577 = vmatprep.subr.bf16.mxu0 %v1090
    %1578 = vmatpush2.bf16.msra.mxu0 %v1089
    %1579 = vmatprep.subr.bf16.mxu0 %v1086
    %1580 = vmatpush2.bf16.msra.mxu0 %v1085
    %1581 = vmatprep.subr.bf16.mxu0 %v1082
    %1582 = vmatpush2.bf16.msra.mxu0 %v1081
    %1583 = vmatprep.subr.bf16.mxu0 %v1078
    %1584 = vmatpush2.bf16.msra.mxu0 %v1077
    %1585 = vmatprep.subr.bf16.mxu0 %v1074
    %1586 = vmatpush2.bf16.msra.mxu0 %v1073
    %1587 = vmatprep.subr.bf16.mxu0 %v1070
    %1588 = vmatpush2.bf16.msra.mxu0 %v1069
    %1589 = vmatprep.subr.bf16.mxu0 %v1066
    %1590 = vmatpush2.bf16.msra.mxu0 %v1065
    %1591 = vmatprep.subr.bf16.mxu0 %v1062
    %1592 = vmatpush2.bf16.msra.mxu0 %v1061
    %1593 = vmatprep.mubr.bf16.mxu0 %v291
    %1594 = vmatmul.mubr.bf16.gmra.mxu0 %v290
    %v1595 = vpop.f32.mrf.mxu0
    %v1596 = vadd.f32 %v1553, %v1595
    %v1597 = vpop.f32.mrf.mxu0
    %v1598 = vadd.f32 %v1555, %v1597
    %v1599 = vpop.f32.mrf.mxu0
    %v1600 = vadd.f32 %v1557, %v1599
    %v1601 = vpop.f32.mrf.mxu0
    %v1602 = vadd.f32 %v1559, %v1601
    %1603 = vdwg.mxu0
    %1604 = vmatprep.subr.bf16.mxu0 0
    %1605 = vmatpush1.bf16.msra.mxu0 0
    %1606 = vmatprep.subr.bf16.mxu0 0
    %1607 = vmatpush1.bf16.msra.mxu0 0
    %1608 = vmatprep.subr.bf16.mxu0 0
    %1609 = vmatpush1.bf16.msra.mxu0 0
    %1610 = vmatprep.subr.bf16.mxu0 0
    %1611 = vmatpush1.bf16.msra.mxu0 0
    %1612 = vmatprep.subr.bf16.mxu0 0
    %1613 = vmatpush1.bf16.msra.mxu0 0
    %1614 = vmatprep.subr.bf16.mxu0 0
    %1615 = vmatpush1.bf16.msra.mxu0 0
    %1616 = vmatprep.subr.bf16.mxu0 %v1098
    %1617 = vmatpush1.bf16.msra.mxu0 %v1097
    %1618 = vmatprep.subr.bf16.mxu0 %v1094
    %1619 = vmatpush1.bf16.msra.mxu0 %v1093
    %1620 = vmatprep.subr.bf16.mxu0 0
    %1621 = vmatpush2.bf16.msra.mxu0 0
    %1622 = vmatprep.subr.bf16.mxu0 0
    %1623 = vmatpush2.bf16.msra.mxu0 0
    %1624 = vmatprep.subr.bf16.mxu0 0
    %1625 = vmatpush2.bf16.msra.mxu0 0
    %1626 = vmatprep.subr.bf16.mxu0 0
    %1627 = vmatpush2.bf16.msra.mxu0 0
    %1628 = vmatprep.subr.bf16.mxu0 0
    %1629 = vmatpush2.bf16.msra.mxu0 0
    %1630 = vmatprep.subr.bf16.mxu0 0
    %1631 = vmatpush2.bf16.msra.mxu0 0
    %1632 = vmatprep.subr.bf16.mxu0 0
    %1633 = vmatpush2.bf16.msra.mxu0 0
    %1634 = vmatprep.subr.bf16.mxu0 0
    %1635 = vmatpush2.bf16.msra.mxu0 0
    %1636 = vmatprep.mubr.bf16.mxu0 0
    %1637 = vmatmul.mubr.bf16.gmra.mxu0 %v1301
    %v1638 = vpop.f32.mrf.mxu0
    %v1639 = vadd.f32 %v1596, %v1638
    %v1640 = vpop.f32.mrf.mxu0
    %v1641 = vadd.f32 %v1598, %v1640
    %v1642 = vpop.f32.mrf.mxu0
    %v1643 = vadd.f32 %v1600, %v1642
    %v1644 = vpop.f32.mrf.mxu0
    %v1645 = vadd.f32 %v1602, %v1644
    %1646 = vdwg.mxu0
    %v1647 = vmax.f32 %v1467, 0.0
    %v1648 = vmax.f32 %v1469, 0.0
    %v1649 = vmax.f32 %v1639, 0.0
    %v1650 = vmax.f32 %v1641, 0.0
    %v1651 = vmax.f32 %v1471, 0.0
    %v1652 = vmax.f32 %v1473, 0.0
    %v1653 = vmax.f32 %v1643, 0.0
    %v1654 = vmax.f32 %v1645, 0.0
    %v1655 = vpack.c.bf16 %v1651, %v1647
    %v1656 = vpack.c.bf16 %v1652, %v1648
    %v1657 = vpack.c.bf16 %v1653, %v1649
    %v1658 = vpack.c.bf16 %v1654, %v1650
    %v1659 = vld [vmem:[%s3] sm:$0xff]
    %v1660 = vld [vmem:[%s3 + $0x8] sm:$0xf]
    %v1661 = vld [vmem:[%s3 + $0xc] sm:$0xff]
    %v1662 = vld [vmem:[%s3 + $0x14] sm:$0xf]
    %v1663 = vld [vmem:[%s3 + $0x18] sm:$0xff]
    %v1664 = vld [vmem:[%s3 + $0x20] sm:$0xf]
    %v1665 = vld [vmem:[%s3 + $0x24] sm:$0xff]
    %v1666 = vld [vmem:[%s3 + $0x2c] sm:$0xf]
    %v1667 = vld [vmem:[%s3 + $0x30] sm:$0xff]
    %v1668 = vld [vmem:[%s3 + $0x38] sm:$0xf]
    %v1669 = vld [vmem:[%s3 + $0x3c] sm:$0xff]
    %v1670 = vld [vmem:[%s3 + $0x44] sm:$0xf]
    %v1671 = vld [vmem:[%s3 + $0x48] sm:$0xff]
    %v1672 = vld [vmem:[%s3 + $0x50] sm:$0xf]
    %v1673 = vld [vmem:[%s3 + $0x54] sm:$0xff]
    %v1674 = vld [vmem:[%s3 + $0x5c] sm:$0xf]
    %v1675 = vld [vmem:[%s3 + $0x60] sm:$0xff]
    %v1676 = vld [vmem:[%s3 + $0x68] sm:$0xf]
    %v1677 = vld [vmem:[%s3 + $0x6c] sm:$0xff]
    %v1678 = vld [vmem:[%s3 + $0x74] sm:$0xf]
    %v1679 = vld [vmem:[%s3 + $0x78] sm:$0xff]
    %v1680 = vld [vmem:[%s3 + $0x80] sm:$0xf]
    %v1681 = vld [vmem:[%s3 + $0x84] sm:$0xff]
    %v1682 = vld [vmem:[%s3 + $0x8c] sm:$0xf]
    %v1683 = vld [vmem:[%s3 + $0x90] sm:$0xff]
    %v1684 = vld [vmem:[%s3 + $0x98] sm:$0xf]
    %v1685 = vld [vmem:[%s3 + $0x9c] sm:$0xff]
    %v1686 = vld [vmem:[%s3 + $0xa4] sm:$0xf]
    %v1687 = vld [vmem:[%s3 + $0xa8] sm:$0xff]
    %v1688 = vld [vmem:[%s3 + $0xb0] sm:$0xf]
    %v1689 = vld [vmem:[%s3 + $0xb4] sm:$0xff]
    %v1690 = vld [vmem:[%s3 + $0xbc] sm:$0xf]
    %v1691 = vld [vmem:[%s3 + $0xc0] sm:$0xff]
    %v1692 = vld [vmem:[%s3 + $0xc8] sm:$0xf]
    %v1693 = vld [vmem:[%s3 + $0xcc] sm:$0xff]
    %v1694 = vld [vmem:[%s3 + $0xd4] sm:$0xf]
    %v1695 = vld [vmem:[%s3 + $0xd8] sm:$0xff]
    %v1696 = vld [vmem:[%s3 + $0xe0] sm:$0xf]
    %v1697 = vld [vmem:[%s3 + $0xe4] sm:$0xff]
    %v1698 = vld [vmem:[%s3 + $0xec] sm:$0xf]
    %v1699 = vld [vmem:[%s3 + $0xf0] sm:$0xff]
    %v1700 = vld [vmem:[%s3 + $0xf8] sm:$0xf]
    %v1701 = vld [vmem:[%s3 + $0xfc] sm:$0xff]
    %v1702 = vld [vmem:[%s3 + $0x104] sm:$0xf]
    %v1703 = vld [vmem:[%s3 + $0x108] sm:$0xff]
    %v1704 = vld [vmem:[%s3 + $0x110] sm:$0xf]
    %v1705 = vld [vmem:[%s3 + $0x114] sm:$0xff]
    %v1706 = vld [vmem:[%s3 + $0x11c] sm:$0xf]
    %v1707 = vld [vmem:[%s3 + $0x120] sm:$0xff]
    %v1708 = vld [vmem:[%s3 + $0x128] sm:$0xf]
    %v1709 = vld [vmem:[%s3 + $0x12c] sm:$0xff]
    %v1710 = vld [vmem:[%s3 + $0x134] sm:$0xf]
    %v1711 = vld [vmem:[%s3 + $0x138] sm:$0xff]
    %v1712 = vld [vmem:[%s3 + $0x140] sm:$0xf]
    %v1713 = vld [vmem:[%s3 + $0x144] sm:$0xff]
    %v1714 = vld [vmem:[%s3 + $0x14c] sm:$0xf]
    %v1715 = vld [vmem:[%s3 + $0x150] sm:$0xff]
    %v1716 = vld [vmem:[%s3 + $0x158] sm:$0xf]
    %v1717 = vld [vmem:[%s3 + $0x15c] sm:$0xff]
    %v1718 = vld [vmem:[%s3 + $0x164] sm:$0xf]
    %v1719 = vld [vmem:[%s3 + $0x168] sm:$0xff]
    %v1720 = vld [vmem:[%s3 + $0x170] sm:$0xf]
    %v1721 = vld [vmem:[%s3 + $0x174] sm:$0xff]
    %v1722 = vld [vmem:[%s3 + $0x17c] sm:$0xf]
    %v1723 = vld [vmem:[%s3 + $0x180] sm:$0xff]
    %v1724 = vld [vmem:[%s3 + $0x188] sm:$0xf]
    %v1725 = vld [vmem:[%s3 + $0x18c] sm:$0xff]
    %v1726 = vld [vmem:[%s3 + $0x194] sm:$0xf]
    %v1727 = vld [vmem:[%s3 + $0x198] sm:$0xff]
    %v1728 = vld [vmem:[%s3 + $0x1a0] sm:$0xf]
    %v1729 = vld [vmem:[%s3 + $0x1a4] sm:$0xff]
    %v1730 = vld [vmem:[%s3 + $0x1ac] sm:$0xf]
    %v1731 = vld [vmem:[%s3 + $0x1b0] sm:$0xff]
    %v1732 = vld [vmem:[%s3 + $0x1b8] sm:$0xf]
    %v1733 = vld [vmem:[%s3 + $0x1bc] sm:$0xff]
    %v1734 = vld [vmem:[%s3 + $0x1c4] sm:$0xf]
    %v1735 = vld [vmem:[%s3 + $0x1c8] sm:$0xff]
    %v1736 = vld [vmem:[%s3 + $0x1d0] sm:$0xf]
    %v1737 = vld [vmem:[%s3 + $0x1d4] sm:$0xff]
    %v1738 = vld [vmem:[%s3 + $0x1dc] sm:$0xf]
    %v1739 = vld [vmem:[%s3 + $0x1e0] sm:$0xff]
    %v1740 = vld [vmem:[%s3 + $0x1e8] sm:$0xf]
    %v1741 = vld [vmem:[%s3 + $0x1ec] sm:$0xff]
    %v1742 = vld [vmem:[%s3 + $0x1f4] sm:$0xf]
    %v1743 = vld [vmem:[%s3 + $0x1f8] sm:$0xff]
    %v1744 = vld [vmem:[%s3 + $0x200] sm:$0xf]
    %v1745 = vld [vmem:[%s3 + $0x204] sm:$0xff]
    %v1746 = vld [vmem:[%s3 + $0x20c] sm:$0xf]
    %v1747 = vld [vmem:[%s3 + $0x210] sm:$0xff]
    %v1748 = vld [vmem:[%s3 + $0x218] sm:$0xf]
    %v1749 = vld [vmem:[%s3 + $0x21c] sm:$0xff]
    %v1750 = vld [vmem:[%s3 + $0x224] sm:$0xf]
    %v1751 = vld [vmem:[%s3 + $0x228] sm:$0xff]
    %v1752 = vld [vmem:[%s3 + $0x230] sm:$0xf]
    %v1753 = vld [vmem:[%s3 + $0x234] sm:$0xff]
    %v1754 = vld [vmem:[%s3 + $0x23c] sm:$0xf]
    %v1755 = vld [vmem:[%s3 + $0x240] sm:$0xff]
    %v1756 = vld [vmem:[%s3 + $0x248] sm:$0xf]
    %v1757 = vld [vmem:[%s3 + $0x24c] sm:$0xff]
    %v1758 = vld [vmem:[%s3 + $0x254] sm:$0xf]
    %v1759 = vld [vmem:[%s3 + $0x258] sm:$0xff]
    %v1760 = vld [vmem:[%s3 + $0x260] sm:$0xf]
    %v1761 = vld [vmem:[%s3 + $0x264] sm:$0xff]
    %v1762 = vld [vmem:[%s3 + $0x26c] sm:$0xf]
    %v1763 = vld [vmem:[%s3 + $0x270] sm:$0xff]
    %v1764 = vld [vmem:[%s3 + $0x278] sm:$0xf]
    %v1765 = vld [vmem:[%s3 + $0x27c] sm:$0xff]
    %v1766 = vld [vmem:[%s3 + $0x284] sm:$0xf]
    %v1767 = vld [vmem:[%s3 + $0x288] sm:$0xff]
    %v1768 = vld [vmem:[%s3 + $0x290] sm:$0xf]
    %v1769 = vld [vmem:[%s3 + $0x294] sm:$0xff]
    %v1770 = vld [vmem:[%s3 + $0x29c] sm:$0xf]
    %v1771 = vld [vmem:[%s3 + $0x2a0] sm:$0xff]
    %v1772 = vld [vmem:[%s3 + $0x2a8] sm:$0xf]
    %v1773 = vld [vmem:[%s3 + $0x2ac] sm:$0xff]
    %v1774 = vld [vmem:[%s3 + $0x2b4] sm:$0xf]
    %v1775 = vld [vmem:[%s3 + $0x2b8] sm:$0xff]
    %v1776 = vld [vmem:[%s3 + $0x2c0] sm:$0xf]
    %v1777 = vld [vmem:[%s3 + $0x2c4] sm:$0xff]
    %v1778 = vld [vmem:[%s3 + $0x2cc] sm:$0xf]
    %v1779 = vld [vmem:[%s3 + $0x2d0] sm:$0xff]
    %v1780 = vld [vmem:[%s3 + $0x2d8] sm:$0xf]
    %v1781 = vld [vmem:[%s3 + $0x2dc] sm:$0xff]
    %v1782 = vld [vmem:[%s3 + $0x2e4] sm:$0xf]
    %v1783 = vld [vmem:[%s3 + $0x2e8] sm:$0xff]
    %v1784 = vld [vmem:[%s3 + $0x2f0] sm:$0xf]
    %v1785 = vld [vmem:[%s3 + $0x2f4] sm:$0xff]
    %v1786 = vld [vmem:[%s3 + $0x2fc] sm:$0xf]
    %v1787 = vld [vmem:[%s4] sm:$0x7]
    %v1789 = vlaneseq
    %v1790 = vshrl.u32 %v1789, 7
    %v1791 = vsub.s32 0, %v1790
    %v1792 = vrot.slane %v1787, %v1791
    %v1793 = vlaneseq
    %v1794 = vshrl.u32 %v1793, 7
    %v1795 = vsub.s32 1, %v1794
    %v1796 = vrot.slane %v1787, %v1795
    %v1797 = vlaneseq
    %v1798 = vshrl.u32 %v1797, 7
    %v1799 = vsub.s32 2, %v1798
    %v1800 = vrot.slane %v1787, %v1799
    %v1932 = vunpack.c.l.b16 %v1659
    %v1933 = vunpack.c.h.b16 %v1659
    %v1934 = vunpack.c.l.b16 %v1660
    %v1935 = vunpack.c.l.b16 %v1661
    %v1936 = vunpack.c.h.b16 %v1661
    %v1937 = vunpack.c.l.b16 %v1662
    %v1938 = vunpack.c.l.b16 %v1663
    %v1939 = vunpack.c.h.b16 %v1663
    %v1940 = vunpack.c.l.b16 %v1664
    %v1941 = vunpack.c.l.b16 %v1665
    %v1942 = vunpack.c.h.b16 %v1665
    %v1943 = vunpack.c.l.b16 %v1666
    %v1944 = vunpack.c.l.b16 %v1667
    %v1945 = vunpack.c.h.b16 %v1667
    %v1946 = vunpack.c.l.b16 %v1668
    %v1947 = vunpack.c.l.b16 %v1669
    %v1948 = vunpack.c.h.b16 %v1669
    %v1949 = vunpack.c.l.b16 %v1670
    %v1950 = vunpack.c.l.b16 %v1671
    %v1951 = vunpack.c.h.b16 %v1671
    %v1952 = vunpack.c.l.b16 %v1672
    %v1953 = vunpack.c.l.b16 %v1673
    %v1954 = vunpack.c.h.b16 %v1673
    %v1955 = vunpack.c.l.b16 %v1674
    %v1956 = vunpack.c.l.b16 %v1675
    %v1957 = vunpack.c.h.b16 %v1675
    %v1958 = vunpack.c.l.b16 %v1676
    %v1959 = vunpack.c.l.b16 %v1677
    %v1960 = vunpack.c.h.b16 %v1677
    %v1961 = vunpack.c.l.b16 %v1678
    %v1962 = vunpack.c.l.b16 %v1679
    %v1963 = vunpack.c.h.b16 %v1679
    %v1964 = vunpack.c.l.b16 %v1680
    %v1965 = vunpack.c.l.b16 %v1681
    %v1966 = vunpack.c.h.b16 %v1681
    %v1967 = vunpack.c.l.b16 %v1682
    %v1968 = vunpack.c.l.b16 %v1683
    %v1969 = vunpack.c.h.b16 %v1683
    %v1970 = vunpack.c.l.b16 %v1684
    %v1971 = vunpack.c.l.b16 %v1685
    %v1972 = vunpack.c.h.b16 %v1685
    %v1973 = vunpack.c.l.b16 %v1686
    %v1974 = vunpack.c.l.b16 %v1687
    %v1975 = vunpack.c.h.b16 %v1687
    %v1976 = vunpack.c.l.b16 %v1688
    %v1977 = vunpack.c.l.b16 %v1689
    %v1978 = vunpack.c.h.b16 %v1689
    %v1979 = vunpack.c.l.b16 %v1690
    %v1980 = vunpack.c.l.b16 %v1691
    %v1981 = vunpack.c.h.b16 %v1691
    %v1982 = vunpack.c.l.b16 %v1692
    %v1983 = vunpack.c.l.b16 %v1693
    %v1984 = vunpack.c.h.b16 %v1693
    %v1985 = vunpack.c.l.b16 %v1694
    %v1986 = vunpack.c.l.b16 %v1695
    %v1987 = vunpack.c.h.b16 %v1695
    %v1988 = vunpack.c.l.b16 %v1696
    %v1989 = vunpack.c.l.b16 %v1697
    %v1990 = vunpack.c.h.b16 %v1697
    %v1991 = vunpack.c.l.b16 %v1698
    %v1992 = vunpack.c.l.b16 %v1699
    %v1993 = vunpack.c.h.b16 %v1699
    %v1994 = vunpack.c.l.b16 %v1700
    %v1995 = vunpack.c.l.b16 %v1701
    %v1996 = vunpack.c.h.b16 %v1701
    %v1997 = vunpack.c.l.b16 %v1702
    %v1998 = vunpack.c.l.b16 %v1703
    %v1999 = vunpack.c.h.b16 %v1703
    %v2000 = vunpack.c.l.b16 %v1704
    %v2001 = vunpack.c.l.b16 %v1705
    %v2002 = vunpack.c.h.b16 %v1705
    %v2003 = vunpack.c.l.b16 %v1706
    %v2004 = vunpack.c.l.b16 %v1707
    %v2005 = vunpack.c.h.b16 %v1707
    %v2006 = vunpack.c.l.b16 %v1708
    %v2007 = vunpack.c.l.b16 %v1709
    %v2008 = vunpack.c.h.b16 %v1709
    %v2009 = vunpack.c.l.b16 %v1710
    %v2010 = vunpack.c.l.b16 %v1711
    %v2011 = vunpack.c.h.b16 %v1711
    %v2012 = vunpack.c.l.b16 %v1712
    %v2013 = vunpack.c.l.b16 %v1713
    %v2014 = vunpack.c.h.b16 %v1713
    %v2015 = vunpack.c.l.b16 %v1714
    %v2016 = vunpack.c.l.b16 %v1715
    %v2017 = vunpack.c.h.b16 %v1715
    %v2018 = vunpack.c.l.b16 %v1716
    %v2019 = vunpack.c.l.b16 %v1717
    %v2020 = vunpack.c.h.b16 %v1717
    %v2021 = vunpack.c.l.b16 %v1718
    %v2022 = vunpack.c.l.b16 %v1719
    %v2023 = vunpack.c.h.b16 %v1719
    %v2024 = vunpack.c.l.b16 %v1720
    %v2025 = vunpack.c.l.b16 %v1721
    %v2026 = vunpack.c.h.b16 %v1721
    %v2027 = vunpack.c.l.b16 %v1722
    %v2028 = vunpack.c.l.b16 %v1723
    %v2029 = vunpack.c.h.b16 %v1723
    %v2030 = vunpack.c.l.b16 %v1724
    %v2031 = vunpack.c.l.b16 %v1725
    %v2032 = vunpack.c.h.b16 %v1725
    %v2033 = vunpack.c.l.b16 %v1726
    %v2034 = vunpack.c.l.b16 %v1727
    %v2035 = vunpack.c.h.b16 %v1727
    %v2036 = vunpack.c.l.b16 %v1728
    %v2037 = vunpack.c.l.b16 %v1729
    %v2038 = vunpack.c.h.b16 %v1729
    %v2039 = vunpack.c.l.b16 %v1730
    %v2040 = vunpack.c.l.b16 %v1731
    %v2041 = vunpack.c.h.b16 %v1731
    %v2042 = vunpack.c.l.b16 %v1732
    %v2043 = vunpack.c.l.b16 %v1733
    %v2044 = vunpack.c.h.b16 %v1733
    %v2045 = vunpack.c.l.b16 %v1734
    %v2046 = vunpack.c.l.b16 %v1735
    %v2047 = vunpack.c.h.b16 %v1735
    %v2048 = vunpack.c.l.b16 %v1736
    %v2049 = vunpack.c.l.b16 %v1737
    %v2050 = vunpack.c.h.b16 %v1737
    %v2051 = vunpack.c.l.b16 %v1738
    %v2052 = vunpack.c.l.b16 %v1739
    %v2053 = vunpack.c.h.b16 %v1739
    %v2054 = vunpack.c.l.b16 %v1740
    %v2055 = vunpack.c.l.b16 %v1741
    %v2056 = vunpack.c.h.b16 %v1741
    %v2057 = vunpack.c.l.b16 %v1742
    %v2058 = vunpack.c.l.b16 %v1743
    %v2059 = vunpack.c.h.b16 %v1743
    %v2060 = vunpack.c.l.b16 %v1744
    %v2061 = vunpack.c.l.b16 %v1745
    %v2062 = vunpack.c.h.b16 %v1745
    %v2063 = vunpack.c.l.b16 %v1746
    %v2064 = vunpack.c.l.b16 %v1747
    %v2065 = vunpack.c.h.b16 %v1747
    %v2066 = vunpack.c.l.b16 %v1748
    %v2067 = vunpack.c.l.b16 %v1749
    %v2068 = vunpack.c.h.b16 %v1749
    %v2069 = vunpack.c.l.b16 %v1750
    %v2070 = vunpack.c.l.b16 %v1751
    %v2071 = vunpack.c.h.b16 %v1751
    %v2072 = vunpack.c.l.b16 %v1752
    %v2073 = vunpack.c.l.b16 %v1753
    %v2074 = vunpack.c.h.b16 %v1753
    %v2075 = vunpack.c.l.b16 %v1754
    %v2076 = vunpack.c.l.b16 %v1755
    %v2077 = vunpack.c.h.b16 %v1755
    %v2078 = vunpack.c.l.b16 %v1756
    %v2079 = vunpack.c.l.b16 %v1757
    %v2080 = vunpack.c.h.b16 %v1757
    %v2081 = vunpack.c.l.b16 %v1758
    %v2082 = vunpack.c.l.b16 %v1759
    %v2083 = vunpack.c.h.b16 %v1759
    %v2084 = vunpack.c.l.b16 %v1760
    %v2085 = vunpack.c.l.b16 %v1761
    %v2086 = vunpack.c.h.b16 %v1761
    %v2087 = vunpack.c.l.b16 %v1762
    %v2088 = vunpack.c.l.b16 %v1763
    %v2089 = vunpack.c.h.b16 %v1763
    %v2090 = vunpack.c.l.b16 %v1764
    %v2091 = vunpack.c.l.b16 %v1765
    %v2092 = vunpack.c.h.b16 %v1765
    %v2093 = vunpack.c.l.b16 %v1766
    %v2094 = vunpack.c.l.b16 %v1767
    %v2095 = vunpack.c.h.b16 %v1767
    %v2096 = vunpack.c.l.b16 %v1768
    %v2097 = vunpack.c.l.b16 %v1769
    %v2098 = vunpack.c.h.b16 %v1769
    %v2099 = vunpack.c.l.b16 %v1770
    %v2100 = vunpack.c.l.b16 %v1771
    %v2101 = vunpack.c.h.b16 %v1771
    %v2102 = vunpack.c.l.b16 %v1772
    %v2103 = vunpack.c.l.b16 %v1773
    %v2104 = vunpack.c.h.b16 %v1773
    %v2105 = vunpack.c.l.b16 %v1774
    %v2106 = vunpack.c.l.b16 %v1775
    %v2107 = vunpack.c.h.b16 %v1775
    %v2108 = vunpack.c.l.b16 %v1776
    %v2109 = vunpack.c.l.b16 %v1777
    %v2110 = vunpack.c.h.b16 %v1777
    %v2111 = vunpack.c.l.b16 %v1778
    %v2112 = vunpack.c.l.b16 %v1779
    %v2113 = vunpack.c.h.b16 %v1779
    %v2114 = vunpack.c.l.b16 %v1780
    %v2115 = vunpack.c.l.b16 %v1781
    %v2116 = vunpack.c.h.b16 %v1781
    %v2117 = vunpack.c.l.b16 %v1782
    %v2118 = vunpack.c.l.b16 %v1783
    %v2119 = vunpack.c.h.b16 %v1783
    %v2120 = vunpack.c.l.b16 %v1784
    %v2121 = vunpack.c.l.b16 %v1785
    %v2122 = vunpack.c.h.b16 %v1785
    %v2123 = vunpack.c.l.b16 %v1786
    %v2124 = vpack.c.b16 %v1935, %v1932
    %v2125 = vpack.c.b16 %v1936, %v1933
    %v2126 = vpack.c.b16 %v1937, %v1934
    %v2127 = vpack.c.b16 %v1941, %v1938
    %v2128 = vpack.c.b16 %v1942, %v1939
    %v2129 = vpack.c.b16 %v1943, %v1940
    %v2130 = vpack.c.b16 %v1947, %v1944
    %v2131 = vpack.c.b16 %v1948, %v1945
    %v2132 = vpack.c.b16 %v1949, %v1946
    %v2133 = vpack.c.b16 %v1953, %v1950
    %v2134 = vpack.c.b16 %v1954, %v1951
    %v2135 = vpack.c.b16 %v1955, %v1952
    %v2136 = vpack.c.b16 %v1959, %v1956
    %v2137 = vpack.c.b16 %v1960, %v1957
    %v2138 = vpack.c.b16 %v1961, %v1958
    %v2139 = vpack.c.b16 %v1965, %v1962
    %v2140 = vpack.c.b16 %v1966, %v1963
    %v2141 = vpack.c.b16 %v1967, %v1964
    %v2142 = vpack.c.b16 %v1971, %v1968
    %v2143 = vpack.c.b16 %v1972, %v1969
    %v2144 = vpack.c.b16 %v1973, %v1970
    %v2145 = vpack.c.b16 %v1977, %v1974
    %v2146 = vpack.c.b16 %v1978, %v1975
    %v2147 = vpack.c.b16 %v1979, %v1976
    %v2148 = vpack.c.b16 %v1983, %v1980
    %v2149 = vpack.c.b16 %v1984, %v1981
    %v2150 = vpack.c.b16 %v1985, %v1982
    %v2151 = vpack.c.b16 %v1989, %v1986
    %v2152 = vpack.c.b16 %v1990, %v1987
    %v2153 = vpack.c.b16 %v1991, %v1988
    %v2154 = vpack.c.b16 %v1995, %v1992
    %v2155 = vpack.c.b16 %v1996, %v1993
    %v2156 = vpack.c.b16 %v1997, %v1994
    %v2157 = vpack.c.b16 %v2001, %v1998
    %v2158 = vpack.c.b16 %v2002, %v1999
    %v2159 = vpack.c.b16 %v2003, %v2000
    %v2160 = vpack.c.b16 %v2007, %v2004
    %v2161 = vpack.c.b16 %v2008, %v2005
    %v2162 = vpack.c.b16 %v2009, %v2006
    %v2163 = vpack.c.b16 %v2013, %v2010
    %v2164 = vpack.c.b16 %v2014, %v2011
    %v2165 = vpack.c.b16 %v2015, %v2012
    %v2166 = vpack.c.b16 %v2019, %v2016
    %v2167 = vpack.c.b16 %v2020, %v2017
    %v2168 = vpack.c.b16 %v2021, %v2018
    %v2169 = vpack.c.b16 %v2025, %v2022
    %v2170 = vpack.c.b16 %v2026, %v2023
    %v2171 = vpack.c.b16 %v2027, %v2024
    %v2172 = vpack.c.b16 %v2031, %v2028
    %v2173 = vpack.c.b16 %v2032, %v2029
    %v2174 = vpack.c.b16 %v2033, %v2030
    %v2175 = vpack.c.b16 %v2037, %v2034
    %v2176 = vpack.c.b16 %v2038, %v2035
    %v2177 = vpack.c.b16 %v2039, %v2036
    %v2178 = vpack.c.b16 %v2043, %v2040
    %v2179 = vpack.c.b16 %v2044, %v2041
    %v2180 = vpack.c.b16 %v2045, %v2042
    %v2181 = vpack.c.b16 %v2049, %v2046
    %v2182 = vpack.c.b16 %v2050, %v2047
    %v2183 = vpack.c.b16 %v2051, %v2048
    %v2184 = vpack.c.b16 %v2055, %v2052
    %v2185 = vpack.c.b16 %v2056, %v2053
    %v2186 = vpack.c.b16 %v2057, %v2054
    %v2187 = vpack.c.b16 %v2061, %v2058
    %v2188 = vpack.c.b16 %v2062, %v2059
    %v2189 = vpack.c.b16 %v2063, %v2060
    %v2190 = vpack.c.b16 %v2067, %v2064
    %v2191 = vpack.c.b16 %v2068, %v2065
    %v2192 = vpack.c.b16 %v2069, %v2066
    %v2193 = vpack.c.b16 %v2073, %v2070
    %v2194 = vpack.c.b16 %v2074, %v2071
    %v2195 = vpack.c.b16 %v2075, %v2072
    %v2196 = vpack.c.b16 %v2079, %v2076
    %v2197 = vpack.c.b16 %v2080, %v2077
    %v2198 = vpack.c.b16 %v2081, %v2078
    %v2199 = vpack.c.b16 %v2085, %v2082
    %v2200 = vpack.c.b16 %v2086, %v2083
    %v2201 = vpack.c.b16 %v2087, %v2084
    %v2202 = vpack.c.b16 %v2091, %v2088
    %v2203 = vpack.c.b16 %v2092, %v2089
    %v2204 = vpack.c.b16 %v2093, %v2090
    %v2205 = vpack.c.b16 %v2097, %v2094
    %v2206 = vpack.c.b16 %v2098, %v2095
    %v2207 = vpack.c.b16 %v2099, %v2096
    %v2208 = vpack.c.b16 %v2103, %v2100
    %v2209 = vpack.c.b16 %v2104, %v2101
    %v2210 = vpack.c.b16 %v2105, %v2102
    %v2211 = vpack.c.b16 %v2109, %v2106
    %v2212 = vpack.c.b16 %v2110, %v2107
    %v2213 = vpack.c.b16 %v2111, %v2108
    %v2214 = vpack.c.b16 %v2115, %v2112
    %v2215 = vpack.c.b16 %v2116, %v2113
    %v2216 = vpack.c.b16 %v2117, %v2114
    %v2217 = vpack.c.b16 %v2121, %v2118
    %v2218 = vpack.c.b16 %v2122, %v2119
    %v2219 = vpack.c.b16 %v2123, %v2120
    %2316 = vmatprep.subr.bf16.mxu0 %v2146
    %2317 = vmatpush1.bf16.msra.mxu0 %v2145
    %2318 = vmatprep.subr.bf16.mxu0 %v2143
    %2319 = vmatpush1.bf16.msra.mxu0 %v2142
    %2320 = vmatprep.subr.bf16.mxu0 %v2140
    %2321 = vmatpush1.bf16.msra.mxu0 %v2139
    %2322 = vmatprep.subr.bf16.mxu0 %v2137
    %2323 = vmatpush1.bf16.msra.mxu0 %v2136
    %2324 = vmatprep.subr.bf16.mxu0 %v2134
    %2325 = vmatpush1.bf16.msra.mxu0 %v2133
    %2326 = vmatprep.subr.bf16.mxu0 %v2131
    %2327 = vmatpush1.bf16.msra.mxu0 %v2130
    %2328 = vmatprep.subr.bf16.mxu0 %v2128
    %2329 = vmatpush1.bf16.msra.mxu0 %v2127
    %2330 = vmatprep.subr.bf16.mxu0 %v2125
    %2331 = vmatpush1.bf16.msra.mxu0 %v2124
    %2332 = vmatprep.subr.bf16.mxu0 %v2170
    %2333 = vmatpush2.bf16.msra.mxu0 %v2169
    %2334 = vmatprep.subr.bf16.mxu0 %v2167
    %2335 = vmatpush2.bf16.msra.mxu0 %v2166
    %2336 = vmatprep.subr.bf16.mxu0 %v2164
    %2337 = vmatpush2.bf16.msra.mxu0 %v2163
    %2338 = vmatprep.subr.bf16.mxu0 %v2161
    %2339 = vmatpush2.bf16.msra.mxu0 %v2160
    %2340 = vmatprep.subr.bf16.mxu0 %v2158
    %2341 = vmatpush2.bf16.msra.mxu0 %v2157
    %2342 = vmatprep.subr.bf16.mxu0 %v2155
    %2343 = vmatpush2.bf16.msra.mxu0 %v2154
    %2344 = vmatprep.subr.bf16.mxu0 %v2152
    %2345 = vmatpush2.bf16.msra.mxu0 %v2151
    %2346 = vmatprep.subr.bf16.mxu0 %v2149
    %2347 = vmatpush2.bf16.msra.mxu0 %v2148
    %2348 = vmatprep.mubr.bf16.mxu0 %v1656
    %2349 = vmatmul.mubr.bf16.gmra.mxu0 %v1655
    %v2350 = vpop.f32.mrf.mxu0
    %v2351 = vadd.f32 %v1792, %v2350
    %v2352 = vpop.f32.mrf.mxu0
    %v2353 = vadd.f32 %v1796, %v2352
    %v2354 = vpop.f32.mrf.mxu0
    %v2355 = vadd.f32 %v1792, %v2354
    %v2356 = vpop.f32.mrf.mxu0
    %v2357 = vadd.f32 %v1796, %v2356
    %2358 = vdwg.mxu0
    %2359 = vmatprep.subr.bf16.mxu0 %v2194
    %2360 = vmatpush1.bf16.msra.mxu0 %v2193
    %2361 = vmatprep.subr.bf16.mxu0 %v2191
    %2362 = vmatpush1.bf16.msra.mxu0 %v2190
    %2363 = vmatprep.subr.bf16.mxu0 %v2188
    %2364 = vmatpush1.bf16.msra.mxu0 %v2187
    %2365 = vmatprep.subr.bf16.mxu0 %v2185
    %2366 = vmatpush1.bf16.msra.mxu0 %v2184
    %2367 = vmatprep.subr.bf16.mxu0 %v2182
    %2368 = vmatpush1.bf16.msra.mxu0 %v2181
    %2369 = vmatprep.subr.bf16.mxu0 %v2179
    %2370 = vmatpush1.bf16.msra.mxu0 %v2178
    %2371 = vmatprep.subr.bf16.mxu0 %v2176
    %2372 = vmatpush1.bf16.msra.mxu0 %v2175
    %2373 = vmatprep.subr.bf16.mxu0 %v2173
    %2374 = vmatpush1.bf16.msra.mxu0 %v2172
    %2375 = vmatprep.subr.bf16.mxu0 %v2218
    %2376 = vmatpush2.bf16.msra.mxu0 %v2217
    %2377 = vmatprep.subr.bf16.mxu0 %v2215
    %2378 = vmatpush2.bf16.msra.mxu0 %v2214
    %2379 = vmatprep.subr.bf16.mxu0 %v2212
    %2380 = vmatpush2.bf16.msra.mxu0 %v2211
    %2381 = vmatprep.subr.bf16.mxu0 %v2209
    %2382 = vmatpush2.bf16.msra.mxu0 %v2208
    %2383 = vmatprep.subr.bf16.mxu0 %v2206
    %2384 = vmatpush2.bf16.msra.mxu0 %v2205
    %2385 = vmatprep.subr.bf16.mxu0 %v2203
    %2386 = vmatpush2.bf16.msra.mxu0 %v2202
    %2387 = vmatprep.subr.bf16.mxu0 %v2200
    %2388 = vmatpush2.bf16.msra.mxu0 %v2199
    %2389 = vmatprep.subr.bf16.mxu0 %v2197
    %2390 = vmatpush2.bf16.msra.mxu0 %v2196
    %2391 = vmatprep.mubr.bf16.mxu0 %v1658
    %2392 = vmatmul.mubr.bf16.gmra.mxu0 %v1657
    %v2393 = vpop.f32.mrf.mxu0
    %v2394 = vadd.f32 %v2351, %v2393
    %v2395 = vpop.f32.mrf.mxu0
    %v2396 = vadd.f32 %v2353, %v2395
    %v2397 = vpop.f32.mrf.mxu0
    %v2398 = vadd.f32 %v2355, %v2397
    %v2399 = vpop.f32.mrf.mxu0
    %v2400 = vadd.f32 %v2357, %v2399
    %2401 = vdwg.mxu0
    %2402 = vmatprep.subr.bf16.mxu0 0
    %2403 = vmatpush1.bf16.msra.mxu0 %v2147
    %2404 = vmatprep.subr.bf16.mxu0 0
    %2405 = vmatpush1.bf16.msra.mxu0 %v2144
    %2406 = vmatprep.subr.bf16.mxu0 0
    %2407 = vmatpush1.bf16.msra.mxu0 %v2141
    %2408 = vmatprep.subr.bf16.mxu0 0
    %2409 = vmatpush1.bf16.msra.mxu0 %v2138
    %2410 = vmatprep.subr.bf16.mxu0 0
    %2411 = vmatpush1.bf16.msra.mxu0 %v2135
    %2412 = vmatprep.subr.bf16.mxu0 0
    %2413 = vmatpush1.bf16.msra.mxu0 %v2132
    %2414 = vmatprep.subr.bf16.mxu0 0
    %2415 = vmatpush1.bf16.msra.mxu0 %v2129
    %2416 = vmatprep.subr.bf16.mxu0 0
    %2417 = vmatpush1.bf16.msra.mxu0 %v2126
    %2418 = vmatprep.subr.bf16.mxu0 0
    %2419 = vmatpush2.bf16.msra.mxu0 %v2171
    %2420 = vmatprep.subr.bf16.mxu0 0
    %2421 = vmatpush2.bf16.msra.mxu0 %v2168
    %2422 = vmatprep.subr.bf16.mxu0 0
    %2423 = vmatpush2.bf16.msra.mxu0 %v2165
    %2424 = vmatprep.subr.bf16.mxu0 0
    %2425 = vmatpush2.bf16.msra.mxu0 %v2162
    %2426 = vmatprep.subr.bf16.mxu0 0
    %2427 = vmatpush2.bf16.msra.mxu0 %v2159
    %2428 = vmatprep.subr.bf16.mxu0 0
    %2429 = vmatpush2.bf16.msra.mxu0 %v2156
    %2430 = vmatprep.subr.bf16.mxu0 0
    %2431 = vmatpush2.bf16.msra.mxu0 %v2153
    %2432 = vmatprep.subr.bf16.mxu0 0
    %2433 = vmatpush2.bf16.msra.mxu0 %v2150
    %2434 = vmatprep.mubr.bf16.mxu0 %v1656
    %2435 = vmatmul.mubr.bf16.gmra.mxu0 %v1655
    %v2436 = vpop.f32.mrf.mxu0
    %v2437 = vadd.f32 %v1800, %v2436
    %v2438 = vpop.f32.mrf.mxu0
    %v2439 = vpop.f32.mrf.mxu0
    %v2440 = vadd.f32 %v1800, %v2439
    %v2441 = vpop.f32.mrf.mxu0
    %2442 = vdwg.mxu0
    %2443 = vmatprep.subr.bf16.mxu0 0
    %2444 = vmatpush1.bf16.msra.mxu0 %v2195
    %2445 = vmatprep.subr.bf16.mxu0 0
    %2446 = vmatpush1.bf16.msra.mxu0 %v2192
    %2447 = vmatprep.subr.bf16.mxu0 0
    %2448 = vmatpush1.bf16.msra.mxu0 %v2189
    %2449 = vmatprep.subr.bf16.mxu0 0
    %2450 = vmatpush1.bf16.msra.mxu0 %v2186
    %2451 = vmatprep.subr.bf16.mxu0 0
    %2452 = vmatpush1.bf16.msra.mxu0 %v2183
    %2453 = vmatprep.subr.bf16.mxu0 0
    %2454 = vmatpush1.bf16.msra.mxu0 %v2180
    %2455 = vmatprep.subr.bf16.mxu0 0
    %2456 = vmatpush1.bf16.msra.mxu0 %v2177
    %2457 = vmatprep.subr.bf16.mxu0 0
    %2458 = vmatpush1.bf16.msra.mxu0 %v2174
    %2459 = vmatprep.subr.bf16.mxu0 0
    %2460 = vmatpush2.bf16.msra.mxu0 %v2219
    %2461 = vmatprep.subr.bf16.mxu0 0
    %2462 = vmatpush2.bf16.msra.mxu0 %v2216
    %2463 = vmatprep.subr.bf16.mxu0 0
    %2464 = vmatpush2.bf16.msra.mxu0 %v2213
    %2465 = vmatprep.subr.bf16.mxu0 0
    %2466 = vmatpush2.bf16.msra.mxu0 %v2210
    %2467 = vmatprep.subr.bf16.mxu0 0
    %2468 = vmatpush2.bf16.msra.mxu0 %v2207
    %2469 = vmatprep.subr.bf16.mxu0 0
    %2470 = vmatpush2.bf16.msra.mxu0 %v2204
    %2471 = vmatprep.subr.bf16.mxu0 0
    %2472 = vmatpush2.bf16.msra.mxu0 %v2201
    %2473 = vmatprep.subr.bf16.mxu0 0
    %2474 = vmatpush2.bf16.msra.mxu0 %v2198
    %2475 = vmatprep.mubr.bf16.mxu0 %v1658
    %2476 = vmatmul.mubr.bf16.gmra.mxu0 %v1657
    %v2477 = vpop.f32.mrf.mxu0
    %v2478 = vadd.f32 %v2437, %v2477
    %v2479 = vpop.f32.mrf.mxu0
    %v2480 = vpop.f32.mrf.mxu0
    %v2481 = vadd.f32 %v2440, %v2480
    %v2482 = vpop.f32.mrf.mxu0
    %2483 = vdwg.mxu0
    %v2484 = vmax.f32 %v2394, 0.0
    %v2485 = vmax.f32 %v2396, 0.0
    %v2486 = vmax.f32 %v2478, 0.0
    %v2487 = vmax.f32 %v2398, 0.0
    %v2488 = vmax.f32 %v2400, 0.0
    %v2489 = vmax.f32 %v2481, 0.0
    %v2490 = vpack.c.bf16 %v2487, %v2484
    %v2491 = vpack.c.bf16 %v2488, %v2485
    %v2492 = vpack.c.bf16 %v2489, %v2486
    %v2493 = vld [vmem:[%s5] sm:$0xf]
    %v2494 = vld [vmem:[%s5 + $0x4] sm:$0xf]
    %v2495 = vld [vmem:[%s5 + $0x8] sm:$0xf]
    %v2496 = vld [vmem:[%s5 + $0xc] sm:$0xf]
    %v2497 = vld [vmem:[%s5 + $0x10] sm:$0xf]
    %v2498 = vld [vmem:[%s5 + $0x14] sm:$0xf]
    %v2499 = vld [vmem:[%s5 + $0x18] sm:$0xf]
    %v2500 = vld [vmem:[%s5 + $0x1c] sm:$0xf]
    %v2501 = vld [vmem:[%s5 + $0x20] sm:$0xf]
    %v2502 = vld [vmem:[%s5 + $0x24] sm:$0xf]
    %v2503 = vld [vmem:[%s5 + $0x28] sm:$0xf]
    %v2504 = vld [vmem:[%s5 + $0x2c] sm:$0xf]
    %v2505 = vld [vmem:[%s5 + $0x30] sm:$0xf]
    %v2506 = vld [vmem:[%s5 + $0x34] sm:$0xf]
    %v2507 = vld [vmem:[%s5 + $0x38] sm:$0xf]
    %v2508 = vld [vmem:[%s5 + $0x3c] sm:$0xf]
    %v2509 = vld [vmem:[%s5 + $0x40] sm:$0xf]
    %v2510 = vld [vmem:[%s5 + $0x44] sm:$0xf]
    %v2511 = vld [vmem:[%s5 + $0x48] sm:$0xf]
    %v2512 = vld [vmem:[%s5 + $0x4c] sm:$0xf]
    %v2513 = vld [vmem:[%s5 + $0x50] sm:$0xf]
    %v2514 = vld [vmem:[%s5 + $0x54] sm:$0xf]
    %v2515 = vld [vmem:[%s5 + $0x58] sm:$0xf]
    %v2516 = vld [vmem:[%s5 + $0x5c] sm:$0xf]
    %v2517 = vld [vmem:[%s5 + $0x60] sm:$0xf]
    %v2518 = vld [vmem:[%s5 + $0x64] sm:$0xf]
    %v2519 = vld [vmem:[%s5 + $0x68] sm:$0xf]
    %v2520 = vld [vmem:[%s5 + $0x6c] sm:$0xf]
    %v2521 = vld [vmem:[%s5 + $0x70] sm:$0xf]
    %v2522 = vld [vmem:[%s5 + $0x74] sm:$0xf]
    %v2523 = vld [vmem:[%s5 + $0x78] sm:$0xf]
    %v2524 = vld [vmem:[%s5 + $0x7c] sm:$0xf]
    %v2525 = vld [vmem:[%s5 + $0x80] sm:$0xf]
    %v2526 = vld [vmem:[%s5 + $0x84] sm:$0xf]
    %v2527 = vld [vmem:[%s5 + $0x88] sm:$0xf]
    %v2528 = vld [vmem:[%s5 + $0x8c] sm:$0xf]
    %v2529 = vld [vmem:[%s5 + $0x90] sm:$0xf]
    %v2530 = vld [vmem:[%s5 + $0x94] sm:$0xf]
    %v2531 = vld [vmem:[%s5 + $0x98] sm:$0xf]
    %v2532 = vld [vmem:[%s5 + $0x9c] sm:$0xf]
    %v2533 = vld [vmem:[%s5 + $0xa0] sm:$0xf]
    %v2534 = vld [vmem:[%s5 + $0xa4] sm:$0xf]
    %v2535 = vld [vmem:[%s5 + $0xa8] sm:$0xf]
    %v2536 = vld [vmem:[%s5 + $0xac] sm:$0xf]
    %v2537 = vld [vmem:[%s5 + $0xb0] sm:$0xf]
    %v2538 = vld [vmem:[%s5 + $0xb4] sm:$0xf]
    %v2539 = vld [vmem:[%s5 + $0xb8] sm:$0xf]
    %v2540 = vld [vmem:[%s5 + $0xbc] sm:$0xf]
    %v2541 = vld [vmem:[%s6] sm:$0x1]
    %v2543 = vlaneseq
    %v2544 = vshrl.u32 %v2543, 7
    %v2545 = vsub.s32 0, %v2544
    %v2546 = vrot.slane %v2541, %v2545
    %v2596 = vunpack.c.l.b16 %v2493
    %v2597 = vunpack.c.l.b16 %v2494
    %v2598 = vunpack.c.l.b16 %v2495
    %v2599 = vunpack.c.l.b16 %v2496
    %v2600 = vunpack.c.l.b16 %v2497
    %v2601 = vunpack.c.l.b16 %v2498
    %v2602 = vunpack.c.l.b16 %v2499
    %v2603 = vunpack.c.l.b16 %v2500
    %v2604 = vunpack.c.l.b16 %v2501
    %v2605 = vunpack.c.l.b16 %v2502
    %v2606 = vunpack.c.l.b16 %v2503
    %v2607 = vunpack.c.l.b16 %v2504
    %v2608 = vunpack.c.l.b16 %v2505
    %v2609 = vunpack.c.l.b16 %v2506
    %v2610 = vunpack.c.l.b16 %v2507
    %v2611 = vunpack.c.l.b16 %v2508
    %v2612 = vunpack.c.l.b16 %v2509
    %v2613 = vunpack.c.l.b16 %v2510
    %v2614 = vunpack.c.l.b16 %v2511
    %v2615 = vunpack.c.l.b16 %v2512
    %v2616 = vunpack.c.l.b16 %v2513
    %v2617 = vunpack.c.l.b16 %v2514
    %v2618 = vunpack.c.l.b16 %v2515
    %v2619 = vunpack.c.l.b16 %v2516
    %v2620 = vunpack.c.l.b16 %v2517
    %v2621 = vunpack.c.l.b16 %v2518
    %v2622 = vunpack.c.l.b16 %v2519
    %v2623 = vunpack.c.l.b16 %v2520
    %v2624 = vunpack.c.l.b16 %v2521
    %v2625 = vunpack.c.l.b16 %v2522
    %v2626 = vunpack.c.l.b16 %v2523
    %v2627 = vunpack.c.l.b16 %v2524
    %v2628 = vunpack.c.l.b16 %v2525
    %v2629 = vunpack.c.l.b16 %v2526
    %v2630 = vunpack.c.l.b16 %v2527
    %v2631 = vunpack.c.l.b16 %v2528
    %v2632 = vunpack.c.l.b16 %v2529
    %v2633 = vunpack.c.l.b16 %v2530
    %v2634 = vunpack.c.l.b16 %v2531
    %v2635 = vunpack.c.l.b16 %v2532
    %v2636 = vunpack.c.l.b16 %v2533
    %v2637 = vunpack.c.l.b16 %v2534
    %v2638 = vunpack.c.l.b16 %v2535
    %v2639 = vunpack.c.l.b16 %v2536
    %v2640 = vunpack.c.l.b16 %v2537
    %v2641 = vunpack.c.l.b16 %v2538
    %v2642 = vunpack.c.l.b16 %v2539
    %v2643 = vunpack.c.l.b16 %v2540
    %v2644 = vpack.c.b16 %v2597, %v2596
    %v2645 = vpack.c.b16 %v2599, %v2598
    %v2646 = vpack.c.b16 %v2601, %v2600
    %v2647 = vpack.c.b16 %v2603, %v2602
    %v2648 = vpack.c.b16 %v2605, %v2604
    %v2649 = vpack.c.b16 %v2607, %v2606
    %v2650 = vpack.c.b16 %v2609, %v2608
    %v2651 = vpack.c.b16 %v2611, %v2610
    %v2652 = vpack.c.b16 %v2613, %v2612
    %v2653 = vpack.c.b16 %v2615, %v2614
    %v2654 = vpack.c.b16 %v2617, %v2616
    %v2655 = vpack.c.b16 %v2619, %v2618
    %v2656 = vpack.c.b16 %v2621, %v2620
    %v2657 = vpack.c.b16 %v2623, %v2622
    %v2658 = vpack.c.b16 %v2625, %v2624
    %v2659 = vpack.c.b16 %v2627, %v2626
    %v2660 = vpack.c.b16 %v2629, %v2628
    %v2661 = vpack.c.b16 %v2631, %v2630
    %v2662 = vpack.c.b16 %v2633, %v2632
    %v2663 = vpack.c.b16 %v2635, %v2634
    %v2664 = vpack.c.b16 %v2637, %v2636
    %v2665 = vpack.c.b16 %v2639, %v2638
    %v2666 = vpack.c.b16 %v2641, %v2640
    %v2667 = vpack.c.b16 %v2643, %v2642
    %2692 = vmatprep.subr.bf16.mxu0 0
    %2693 = vmatpush1.bf16.msra.mxu0 %v2651
    %2694 = vmatprep.subr.bf16.mxu0 0
    %2695 = vmatpush1.bf16.msra.mxu0 %v2650
    %2696 = vmatprep.subr.bf16.mxu0 0
    %2697 = vmatpush1.bf16.msra.mxu0 %v2649
    %2698 = vmatprep.subr.bf16.mxu0 0
    %2699 = vmatpush1.bf16.msra.mxu0 %v2648
    %2700 = vmatprep.subr.bf16.mxu0 0
    %2701 = vmatpush1.bf16.msra.mxu0 %v2647
    %2702 = vmatprep.subr.bf16.mxu0 0
    %2703 = vmatpush1.bf16.msra.mxu0 %v2646
    %2704 = vmatprep.subr.bf16.mxu0 0
    %2705 = vmatpush1.bf16.msra.mxu0 %v2645
    %2706 = vmatprep.subr.bf16.mxu0 0
    %2707 = vmatpush1.bf16.msra.mxu0 %v2644
    %2708 = vmatprep.subr.bf16.mxu0 0
    %2709 = vmatpush2.bf16.msra.mxu0 %v2659
    %2710 = vmatprep.subr.bf16.mxu0 0
    %2711 = vmatpush2.bf16.msra.mxu0 %v2658
    %2712 = vmatprep.subr.bf16.mxu0 0
    %2713 = vmatpush2.bf16.msra.mxu0 %v2657
    %2714 = vmatprep.subr.bf16.mxu0 0
    %2715 = vmatpush2.bf16.msra.mxu0 %v2656
    %2716 = vmatprep.subr.bf16.mxu0 0
    %2717 = vmatpush2.bf16.msra.mxu0 %v2655
    %2718 = vmatprep.subr.bf16.mxu0 0
    %2719 = vmatpush2.bf16.msra.mxu0 %v2654
    %2720 = vmatprep.subr.bf16.mxu0 0
    %2721 = vmatpush2.bf16.msra.mxu0 %v2653
    %2722 = vmatprep.subr.bf16.mxu0 0
    %2723 = vmatpush2.bf16.msra.mxu0 %v2652
    %2724 = vmatprep.mubr.bf16.mxu0 %v2491
    %2725 = vmatmul.mubr.bf16.gmra.mxu0 %v2490
    %v2726 = vpop.f32.mrf.mxu0
    %v2727 = vadd.f32 %v2546, %v2726
    %v2728 = vpop.f32.mrf.mxu0
    %v2729 = vpop.f32.mrf.mxu0
    %v2730 = vadd.f32 %v2546, %v2729
    %v2731 = vpop.f32.mrf.mxu0
    %2732 = vdwg.mxu0
    %2733 = vmatprep.subr.bf16.mxu0 0
    %2734 = vmatpush1.bf16.msra.mxu0 %v2667
    %2735 = vmatprep.subr.bf16.mxu0 0
    %2736 = vmatpush1.bf16.msra.mxu0 %v2666
    %2737 = vmatprep.subr.bf16.mxu0 0
    %2738 = vmatpush1.bf16.msra.mxu0 %v2665
    %2739 = vmatprep.subr.bf16.mxu0 0
    %2740 = vmatpush1.bf16.msra.mxu0 %v2664
    %2741 = vmatprep.subr.bf16.mxu0 0
    %2742 = vmatpush1.bf16.msra.mxu0 %v2663
    %2743 = vmatprep.subr.bf16.mxu0 0
    %2744 = vmatpush1.bf16.msra.mxu0 %v2662
    %2745 = vmatprep.subr.bf16.mxu0 0
    %2746 = vmatpush1.bf16.msra.mxu0 %v2661
    %2747 = vmatprep.subr.bf16.mxu0 0
    %2748 = vmatpush1.bf16.msra.mxu0 %v2660
    %2749 = vmatprep.subr.bf16.mxu0 0
    %2750 = vmatpush2.bf16.msra.mxu0 0
    %2751 = vmatprep.subr.bf16.mxu0 0
    %2752 = vmatpush2.bf16.msra.mxu0 0
    %2753 = vmatprep.subr.bf16.mxu0 0
    %2754 = vmatpush2.bf16.msra.mxu0 0
    %2755 = vmatprep.subr.bf16.mxu0 0
    %2756 = vmatpush2.bf16.msra.mxu0 0
    %2757 = vmatprep.subr.bf16.mxu0 0
    %2758 = vmatpush2.bf16.msra.mxu0 0
    %2759 = vmatprep.subr.bf16.mxu0 0
    %2760 = vmatpush2.bf16.msra.mxu0 0
    %2761 = vmatprep.subr.bf16.mxu0 0
    %2762 = vmatpush2.bf16.msra.mxu0 0
    %2763 = vmatprep.subr.bf16.mxu0 0
    %2764 = vmatpush2.bf16.msra.mxu0 0
    %2765 = vmatprep.mubr.bf16.mxu0 0
    %2766 = vmatmul.mubr.bf16.gmra.mxu0 %v2492
    %v2767 = vpop.f32.mrf.mxu0
    %v2768 = vadd.f32 %v2727, %v2767
    %v2769 = vpop.f32.mrf.mxu0
    %v2770 = vpop.f32.mrf.mxu0
    %v2771 = vadd.f32 %v2730, %v2770
    %v2772 = vpop.f32.mrf.mxu0
    %2773 = vdwg.mxu0
    %v2774 = vmax.f32 %v2768, 0.0
    %v2775 = vmax.f32 %v2771, 0.0
    %v2776 = vpack.c.bf16 %v2775, %v2774
    %v2777 = vld [vmem:[%s7] sm:$0xf]
    %v2778 = vld [vmem:[%s7 + $0x4] sm:$0xf]
    %v2779 = vld [vmem:[%s7 + $0x8] sm:$0xf]
    %v2780 = vld [vmem:[%s7 + $0xc] sm:$0xf]
    %v2781 = vld [vmem:[%s7 + $0x10] sm:$0xf]
    %v2782 = vld [vmem:[%s7 + $0x14] sm:$0xf]
    %v2783 = vld [vmem:[%s7 + $0x18] sm:$0xf]
    %v2784 = vld [vmem:[%s7 + $0x1c] sm:$0xf]
    %v2785 = vld [vmem:[%s7 + $0x20] sm:$0xf]
    %v2786 = vld [vmem:[%s7 + $0x24] sm:$0xf]
    %v2787 = vld [vmem:[%s7 + $0x28] sm:$0xf]
    %v2788 = vld [vmem:[%s7 + $0x2c] sm:$0xf]
    %v2789 = vld [vmem:[%s7 + $0x30] sm:$0xf]
    %v2790 = vld [vmem:[%s7 + $0x34] sm:$0xf]
    %v2791 = vld [vmem:[%s7 + $0x38] sm:$0xf]
    %v2792 = vld [vmem:[%s7 + $0x3c] sm:$0xf]
    %v2793 = vld [vmem:[%s8] sm:$0x1]
    %v2795 = vlaneseq
    %v2796 = vshrl.u32 %v2795, 7
    %v2797 = vsub.s32 0, %v2796
    %v2798 = vrot.slane %v2793, %v2797
    %v2816 = vunpack.c.l.b16 %v2777
    %v2817 = vunpack.c.l.b16 %v2778
    %v2818 = vunpack.c.l.b16 %v2779
    %v2819 = vunpack.c.l.b16 %v2780
    %v2820 = vunpack.c.l.b16 %v2781
    %v2821 = vunpack.c.l.b16 %v2782
    %v2822 = vunpack.c.l.b16 %v2783
    %v2823 = vunpack.c.l.b16 %v2784
    %v2824 = vunpack.c.l.b16 %v2785
    %v2825 = vunpack.c.l.b16 %v2786
    %v2826 = vunpack.c.l.b16 %v2787
    %v2827 = vunpack.c.l.b16 %v2788
    %v2828 = vunpack.c.l.b16 %v2789
    %v2829 = vunpack.c.l.b16 %v2790
    %v2830 = vunpack.c.l.b16 %v2791
    %v2831 = vunpack.c.l.b16 %v2792
    %v2832 = vpack.c.b16 %v2817, %v2816
    %v2833 = vpack.c.b16 %v2819, %v2818
    %v2834 = vpack.c.b16 %v2821, %v2820
    %v2835 = vpack.c.b16 %v2823, %v2822
    %v2836 = vpack.c.b16 %v2825, %v2824
    %v2837 = vpack.c.b16 %v2827, %v2826
    %v2838 = vpack.c.b16 %v2829, %v2828
    %v2839 = vpack.c.b16 %v2831, %v2830
    %2848 = vmatprep.subr.bf16.mxu0 0
    %2849 = vmatpush1.bf16.msra.mxu0 %v2839
    %2850 = vmatprep.subr.bf16.mxu0 0
    %2851 = vmatpush1.bf16.msra.mxu0 %v2838
    %2852 = vmatprep.subr.bf16.mxu0 0
    %2853 = vmatpush1.bf16.msra.mxu0 %v2837
    %2854 = vmatprep.subr.bf16.mxu0 0
    %2855 = vmatpush1.bf16.msra.mxu0 %v2836
    %2856 = vmatprep.subr.bf16.mxu0 0
    %2857 = vmatpush1.bf16.msra.mxu0 %v2835
    %2858 = vmatprep.subr.bf16.mxu0 0
    %2859 = vmatpush1.bf16.msra.mxu0 %v2834
    %2860 = vmatprep.subr.bf16.mxu0 0
    %2861 = vmatpush1.bf16.msra.mxu0 %v2833
    %2862 = vmatprep.subr.bf16.mxu0 0
    %2863 = vmatpush1.bf16.msra.mxu0 %v2832
    %2864 = vmatprep.subr.bf16.mxu0 0
    %2865 = vmatpush2.bf16.msra.mxu0 0
    %2866 = vmatprep.subr.bf16.mxu0 0
    %2867 = vmatpush2.bf16.msra.mxu0 0
    %2868 = vmatprep.subr.bf16.mxu0 0
    %2869 = vmatpush2.bf16.msra.mxu0 0
    %2870 = vmatprep.subr.bf16.mxu0 0
    %2871 = vmatpush2.bf16.msra.mxu0 0
    %2872 = vmatprep.subr.bf16.mxu0 0
    %2873 = vmatpush2.bf16.msra.mxu0 0
    %2874 = vmatprep.subr.bf16.mxu0 0
    %2875 = vmatpush2.bf16.msra.mxu0 0
    %2876 = vmatprep.subr.bf16.mxu0 0
    %2877 = vmatpush2.bf16.msra.mxu0 0
    %2878 = vmatprep.subr.bf16.mxu0 0
    %2879 = vmatpush2.bf16.msra.mxu0 0
    %2880 = vmatprep.mubr.bf16.mxu0 0
    %2881 = vmatmul.mubr.bf16.gmra.mxu0 %v2776
    %v2882 = vpop.f32.mrf.mxu0
    %v2883 = vadd.f32 %v2798, %v2882
    %v2884 = vpop.f32.mrf.mxu0
    %v2885 = vpop.f32.mrf.mxu0
    %v2886 = vadd.f32 %v2798, %v2885
    %v2887 = vpop.f32.mrf.mxu0
    %2888 = vdwg.mxu0
    %vm2889 = vcmask 523264
    %2890 = vst.msk [vmem:[#allocation2] sm:$0xff] %vm2889, %v2883
    %2891 = vst.msk [vmem:[#allocation2 + $0x8] sm:$0xff] %vm2889, %v2886
    // Predicated region
    $region38: #{observation_encoder.1} parent=1 // pred_check
      _
    $region39: #{observation_encoder.1} parent=1 // pred_check_branch
      %2893 = sbr.rel (0) target = $region41
    $region40: #{observation_encoder.1} parent=1 // pred_region
      %s2895 = ssub.s32 256, 256
      %2896 = vsyncadd [#allocation3], %s2895
      %s2897 = sshll.u32 [#allocation2], 4
      %s2898 = int_to_ptr.vmem [resolvable:$true] %s2897
      %2903 = dma.vmem_to_hbm [thread:$0]  %s2898, 256, %s9, [#allocation3], 128, 128, 8
    $region41: #{observation_encoder.1} parent=1 // pred_fallthru
      _
    // Predicated region
    $region42: #{observation_encoder.1} parent=1 // pred_check
      _
    $region43: #{observation_encoder.1} parent=1 // pred_check_branch
      %2905 = sbr.rel (0) target = $region45
    $region44: #{observation_encoder.1} parent=1 // pred_region
      %2906 = dma.done [#allocation3], 256
    $region45: #{observation_encoder.1} parent=1 // pred_fallthru
      _
    %2907 = vsyncpa [#allocation3], 1

</llo_original>
